<compile_context>
chip_gen: v7x
topology: tpu7x:2x2x1
jax: 0.10.0
libtpu: 0.0.40
codegen_flags: <defaults>
</compile_context>

<pallas_src>
from functools import partial

import jax
import jax.numpy as jnp
from jax.experimental import pallas as pl
from jax.experimental.pallas import tpu as pltpu


# ------------------------------ small helpers ------------------------------

def _round_up(x, m):
    return ((x + m - 1) // m) * m


def _pad2(a, rows, cols):
    return jnp.pad(a, ((0, rows - a.shape[0]), (0, cols - a.shape[1])))


def _vmem_capacity_bytes():
    # Generation-aware VMEM sizing (v7x: 64 MiB, v5e/v6e: 128 MiB per core).
    try:
        return int(pltpu.get_tpu_info().vmem_capacity_bytes)
    except Exception:
        return 64 * 1024 * 1024  # conservative fallback (v7x per-core)


def _pick_gcn_tiles(n_p, h_p, budget_bytes):
    """Largest (tm, tk) dividing n_p whose VMEM footprint fits the budget."""
    for tm in (1024, 512, 256, 128):
        if n_p % tm:
            continue
        for tk in (1024, 512, 256, 128):
            if n_p % tk:
                continue
            need = (2 * tm * tk * 2        # A tile, double-buffered, bf16
                    + 2 * tk * h_p * 2     # Z tile, double-buffered, bf16
                    + 2 * tm * h_p * 2     # output tile, double-buffered, bf16
                    + tm * h_p * 4         # f32 accumulator scratch
                    + 2 * tm * 4 + 2 * h_p * 4   # dinv / bias
                    + (1 << 20))           # slack
            if need <= budget_bytes:
                return tm, tk
    return 128, 128


def _pick_edge_tile(e_p):
    for cand in (2048, 1024, 512, 256, 128):
        if e_p % cand == 0:
            return cand
    return 128


# ----------------------------- one GCN layer --------------------------------
# out = act( dinv ⊙ ( (A+I) @ Z_scaled ) + bias ),  Z_scaled = dinv ⊙ (X @ W)
# which equals act( D^{-1/2}(A+I)D^{-1/2} @ (X @ W) + bias ) exactly.

def _gcn_layer_kernel(a_ref, z_ref, dinv_ref, b_ref, o_ref, acc_ref, *,
                      apply_relu):
    k = pl.program_id(1)

    @pl.when(k == 0)
    def _():
        acc_ref[...] = jnp.zeros_like(acc_ref)

    acc_ref[...] += jnp.dot(a_ref[...], z_ref[...],
                            preferred_element_type=jnp.float32)

    @pl.when(k == pl.num_programs(1) - 1)
    def _():
        out = dinv_ref[...] * acc_ref[...] + b_ref[...]
        if apply_relu:
            out = jnp.maximum(out, 0.0)
        o_ref[...] = out.astype(o_ref.dtype)


def gcn_layer(a_raw, z_scaled, dinv_col, bias, *, apply_relu):
    """a_raw [Np,Np] bf16 (= A+I), z_scaled [Np,Hp] bf16 (= dinv*(X@W)),
    dinv_col [Np,1] f32, bias [1,Hp] f32 -> [Np,Hp] bf16."""
    n_p, h_p = z_scaled.shape
    cap = _vmem_capacity_bytes()
    tm, tk = _pick_gcn_tiles(n_p, h_p, int(cap * 0.7))
    grid = (n_p // tm, n_p // tk)

    flops = 2 * n_p * n_p * h_p
    bytes_accessed = (n_p * n_p * 2 + n_p * h_p * 2 + n_p * 4 + h_p * 4
                      + n_p * h_p * 2)

    return pl.pallas_call(
        partial(_gcn_layer_kernel, apply_relu=apply_relu),
        out_shape=jax.ShapeDtypeStruct((n_p, h_p), jnp.bfloat16),
        grid=grid,
        in_specs=[
            pl.BlockSpec((tm, tk), lambda i, k: (i, k)),   # (A+I) tile (dominant stream)
            pl.BlockSpec((tk, h_p), lambda i, k: (k, 0)),  # pre-scaled Z tile
            pl.BlockSpec((tm, 1), lambda i, k: (i, 0)),    # dinv row strip
            pl.BlockSpec((1, h_p), lambda i, k: (0, 0)),   # bias
        ],
        out_specs=pl.BlockSpec((tm, h_p), lambda i, k: (i, 0)),
        scratch_shapes=[pltpu.VMEM((tm, h_p), jnp.float32)],   # f32 accumulator
        compiler_params=pltpu.CompilerParams(
            # row strips independent -> megacore-shardable on v7x;
            # K (reduction) axis carries the accumulator -> sequential.
            dimension_semantics=("parallel", "arbitrary"),
            vmem_limit_bytes=int(cap * 0.8),
        ),
        cost_estimate=pl.CostEstimate(flops=flops, transcendentals=0,
                                      bytes_accessed=bytes_accessed),
    )(a_raw, z_scaled, dinv_col, bias)


# -------------------------------- edge MLP ----------------------------------

def _edge_mlp_kernel(ein_ref, w1_ref, b1_ref, w2_ref, b2_ref, o_ref):
    h = jnp.dot(ein_ref[...], w1_ref[...], preferred_element_type=jnp.float32)
    h = jnp.maximum(h + b1_ref[...], 0.0).astype(ein_ref.dtype)
    out = jnp.dot(h, w2_ref[...], preferred_element_type=jnp.float32) + b2_ref[...]
    o_ref[...] = out


def edge_mlp(edge_in, w1, b1, w2, b2):
    """edge_in [Ep,Kp] bf16, w1 [Kp,Hm] bf16, w2 [Hm,2] bf16, b* f32
    -> logits [Ep,2] f32 (no lane over-padding on the HBM write)."""
    e_p, k_p = edge_in.shape
    h_m = w1.shape[1]
    n_out = w2.shape[1]          # 2 logits; full last-dim block
    te = _pick_edge_tile(e_p)
    cap = _vmem_capacity_bytes()

    flops = 2 * e_p * k_p * h_m + 2 * e_p * h_m * n_out
    bytes_accessed = ((e_p * k_p + k_p * h_m + h_m * n_out) * 2
                      + (h_m + n_out) * 4 + e_p * n_out * 4)

    return pl.pallas_call(
        _edge_mlp_kernel,
        out_shape=jax.ShapeDtypeStruct((e_p, n_out), jnp.float32),
        grid=(e_p // te,),
        in_specs=[
            pl.BlockSpec((te, k_p), lambda i: (i, 0)),   # edge-feature strip
            pl.BlockSpec((k_p, h_m), lambda i: (0, 0)),
            pl.BlockSpec((1, h_m), lambda i: (0, 0)),
            pl.BlockSpec((h_m, n_out), lambda i: (0, 0)),
            pl.BlockSpec((1, n_out), lambda i: (0, 0)),
        ],
        out_specs=pl.BlockSpec((te, n_out), lambda i: (i, 0)),
        compiler_params=pltpu.CompilerParams(
            dimension_semantics=("parallel",),
            vmem_limit_bytes=int(cap * 0.5),
        ),
        cost_estimate=pl.CostEstimate(flops=flops, transcendentals=0,
                                      bytes_accessed=bytes_accessed),
    )(edge_in, w1, b1, w2, b2)


# ------------------------------ model wrapper -------------------------------

def build_adjacency_and_dinv(edge_index, num_nodes):
    """Raw (A + I) and dinv = rsqrt(row degree); normalization happens in-kernel."""
    src = edge_index[0]
    dst = edge_index[1]
    a = jnp.eye(num_nodes, dtype=jnp.float32)          # self-loops
    a = a.at[dst, src].add(1.0)                        # messages src -> dst
    deg = jnp.sum(a, axis=1)
    dinv = jax.lax.rsqrt(deg)                          # deg >= 1 (self-loop)
    return a, dinv


def init_params(key, node_feat_dim, hidden_dim, edge_feat_dim):
    ks = jax.random.split(key, 4)
    scale = 0.1
    return {
        # GCNConv weight is (in, out) applied as X @ W, plus bias (out,)
        "gcn1_w": scale * jax.random.normal(ks[0], (node_feat_dim, hidden_dim), jnp.float32),
        "gcn1_b": jnp.zeros((1, hidden_dim), jnp.float32),
        "gcn2_w": scale * jax.random.normal(ks[1], (hidden_dim, hidden_dim), jnp.float32),
        "gcn2_b": jnp.zeros((1, hidden_dim), jnp.float32),
        # edge MLP: Linear(2H+Fe, 64) -> ReLU -> Linear(64, 2)
        "mlp_w1": scale * jax.random.normal(ks[2], (2 * hidden_dim + edge_feat_dim, 64), jnp.float32),
        "mlp_b1": jnp.zeros((1, 64), jnp.float32),
        "mlp_w2": scale * jax.random.normal(ks[3], (64, 2), jnp.float32),
        "mlp_b2": jnp.zeros((1, 2), jnp.float32),
    }


def edge_gcn_forward(params, x, edge_index, edge_attr, edge_src, edge_dst):
    n, _ = x.shape
    h = params["gcn1_w"].shape[1]
    e = edge_attr.shape[0]

    n_p = _round_up(n, 128)
    h_p = _round_up(h, 128)

    # ---- raw A + I and dinv (normalization folded into the kernels) ----
    a_raw, dinv = build_adjacency_and_dinv(edge_index, n)
    a_pad = _pad2(a_raw, n_p, n_p).astype(jnp.bfloat16)
    dinv_pad = jnp.pad(dinv, (0, n_p - n))[:, None]        # padded rows -> 0 (kills NaN/garbage)

    b1_pad = _pad2(params["gcn1_b"], 1, h_p)
    b2_pad = _pad2(params["gcn2_b"], 1, h_p)

    # ---- layer 1: tiny X@W1 hoisted; dominant A stream + epilogue in Pallas ----
    z1 = dinv[:, None] * jnp.dot(x, params["gcn1_w"])       # [n, h] f32
    z1_pad = _pad2(z1, n_p, h_p).astype(jnp.bfloat16)
    h1_pad = gcn_layer(a_pad, z1_pad, dinv_pad, b1_pad, apply_relu=True)

    # ---- layer 2: tiny h1@W2 hoisted ----
    z2 = dinv[:, None] * jnp.dot(h1_pad[:n, :h].astype(jnp.float32), params["gcn2_w"])
    z2_pad = _pad2(z2, n_p, h_p).astype(jnp.bfloat16)
    h2_pad = gcn_layer(a_pad, z2_pad, dinv_pad, b2_pad, apply_relu=False)
    h2 = h2_pad[:n, :h]

    # ---- edge_inputs = cat([x[src], x[dst], edge_attr], dim=1) (gather = glue) ----
    # TODO(synk): fuse this gather + concat into edge_mlp via PrefetchScalarGridSpec.
    edge_inputs = jnp.concatenate(
        [h2[edge_src], h2[edge_dst], edge_attr.astype(jnp.bfloat16)], axis=1)

    k = edge_inputs.shape[1]            # 2H + Fe
    k_p = _round_up(k, 128)
    e_p = _round_up(e, 128)
    h_m = _round_up(64, 128)            # MLP hidden 64 -> 128 lanes

    ein_pad = _pad2(edge_inputs, e_p, k_p)
    mw1_pad = _pad2(params["mlp_w1"], k_p, h_m).astype(jnp.bfloat16)
    mb1_pad = _pad2(params["mlp_b1"], 1, h_m)
    mw2_pad = _pad2(params["mlp_w2"], h_m, 2).astype(jnp.bfloat16)   # keep 2 logit cols
    mb2_pad = params["mlp_b2"]                                       # [1, 2]

    out = edge_mlp(ein_pad, mw1_pad, mb1_pad, mw2_pad, mb2_pad)      # [Ep, 2] f32
    return out[:e, :]


# -------------------------------- example run -------------------------------

if __name__ == "__main__":
    key = jax.random.PRNGKey(0)
    k_x, k_ei, k_ea, k_p = jax.random.split(key, 4)

    num_nodes = 16
    node_feat_dim = 8
    hidden_dim = 32
    edge_feat_dim = 8
    num_edges = 64

    x = jax.random.normal(k_x, (num_nodes, node_feat_dim), jnp.float32)
    edge_index = jax.random.randint(k_ei, (2, num_edges), 0, num_nodes, jnp.int32)
    edge_attr = jax.random.normal(k_ea, (num_edges, edge_feat_dim), jnp.float32)
    edge_src = edge_index[0]
    edge_dst = edge_index[1]

    params = init_params(k_p, node_feat_dim, hidden_dim, edge_feat_dim)

    fwd = jax.jit(edge_gcn_forward)
    out = fwd(params, x, edge_index, edge_attr, edge_src, edge_dst)
    out = jax.block_until_ready(out)
    assert out.shape == (num_edges, 2)
    print("KERNEL_OK")
</pallas_src>

<mosaic_0001>
module attributes {stable_mosaic.version = 11 : i64} {
  func.func private @main(%arg0: i32) attributes {dimension_semantics = [#tpu.dimension_semantics<core_parallel>], iteration_bounds = array<i64: 2>, tpu.core_type = #tpu.core_type<sc_scalar_subcore>, window_params = []} {
    return
  }
}

module attributes {stable_mosaic.version = 11 : i64} {
  func.func private @main(%arg0: i32) attributes {dimension_semantics = [#tpu.dimension_semantics<core_parallel>], iteration_bounds = array<i64: 2>, tpu.core_type = #tpu.core_type<sc_scalar_subcore>, window_params = []} {
    return
  }
}

module attributes {stable_mosaic.version = 11 : i64} {
  func.func @_gcn_layer_kernel(%arg0: i32, %arg1: i32, %arg2: memref<128x128xbf16, #tpu.memory_space<vmem>>, %arg3: memref<128x128xbf16, #tpu.memory_space<vmem>>, %arg4: memref<128x1xf32, #tpu.memory_space<vmem>>, %arg5: memref<1x128xf32, #tpu.memory_space<vmem>>, %arg6: memref<128x128xbf16, #tpu.memory_space<vmem>>, %arg7: memref<128x128xf32, #tpu.memory_space<vmem>>) attributes {dimension_semantics = [#tpu.dimension_semantics<parallel>, #tpu.dimension_semantics<arbitrary>], iteration_bounds = array<i64: 1, 1>, scalar_prefetch = 0 : i64, scratch_operands = 1 : i64, tpu.core_type = #tpu.core_type<tc>, window_params = [{transform_indices = @transform_0, window_bounds = array<i64: 128, 128>}, {transform_indices = @transform_1, window_bounds = array<i64: 128, 128>}, {transform_indices = @transform_2, window_bounds = array<i64: 128, 1>}, {pipeline_mode = #tpu.pipeline_mode<synchronous>, transform_indices = @transform_3, window_bounds = array<i64: 1, 128>}, {transform_indices = @transform_4, window_bounds = array<i64: 128, 128>}]} {
    %c0_i32 = arith.constant 0 : i32
    %0 = arith.cmpi eq, %arg1, %c0_i32 : i32
    %1 = arith.extui %0 : i1 to i32
    %c0_i32_0 = arith.constant 0 : i32
    %2 = arith.cmpi ne, %1, %c0_i32_0 : i32
    scf.if %2 {
      %cst_10 = arith.constant 0.000000e+00 : f32
      %12 = vector.broadcast %cst_10 : f32 to vector<128x128xf32>
      %c0_11 = arith.constant 0 : index
      %c0_12 = arith.constant 0 : index
      %13 = vector.load %arg7[%c0_11, %c0_12] : memref<128x128xf32, #tpu.memory_space<vmem>>, vector<128x128xf32>
      tpu.vector_store %arg7[%c0_11, %c0_12], %12 {strides = array<i32>} : memref<128x128xf32, #tpu.memory_space<vmem>>, vector<128x128xf32>,
    } else {
    }
    %c0 = arith.constant 0 : index
    %c0_1 = arith.constant 0 : index
    %3 = vector.load %arg7[%c0, %c0_1] : memref<128x128xf32, #tpu.memory_space<vmem>>, vector<128x128xf32>
    %c0_2 = arith.constant 0 : index
    %c0_3 = arith.constant 0 : index
    %4 = vector.load %arg2[%c0_2, %c0_3] : memref<128x128xbf16, #tpu.memory_space<vmem>>, vector<128x128xbf16>
    %c0_4 = arith.constant 0 : index
    %c0_5 = arith.constant 0 : index
    %5 = vector.load %arg3[%c0_4, %c0_5] : memref<128x128xbf16, #tpu.memory_space<vmem>>, vector<128x128xbf16>
    %cst = arith.constant dense<0.000000e+00> : vector<128x128xf32>
    %6 = tpu.matmul %4, %5, %cst {dimension_numbers = #tpu.dot_dimension_numbers<[1], [0], [0], [1], [0, 0, 1, 1], [], []>} : vector<128x128xbf16>, vector<128x128xbf16>, vector<128x128xf32> -> vector<128x128xf32>
    %7 = arith.addf %3, %6 : vector<128x128xf32>
    %c0_6 = arith.constant 0 : index
    %c0_7 = arith.constant 0 : index
    %8 = vector.load %arg7[%c0_6, %c0_7] : memref<128x128xf32, #tpu.memory_space<vmem>>, vector<128x128xf32>
    tpu.vector_store %arg7[%c0_6, %c0_7], %7 {strides = array<i32>} : memref<128x128xf32, #tpu.memory_space<vmem>>, vector<128x128xf32>,
    %c0_i32_8 = arith.constant 0 : i32
    %9 = arith.cmpi eq, %arg1, %c0_i32_8 : i32
    %10 = arith.extui %9 : i1 to i32
    %c0_i32_9 = arith.constant 0 : i32
    %11 = arith.cmpi ne, %10, %c0_i32_9 : i32
    scf.if %11 {
      %c0_10 = arith.constant 0 : index
      %c0_11 = arith.constant 0 : index
      %12 = vector.load %arg4[%c0_10, %c0_11] : memref<128x1xf32, #tpu.memory_space<vmem>>, vector<128x1xf32>
      %c0_12 = arith.constant 0 : index
      %c0_13 = arith.constant 0 : index
      %13 = vector.load %arg7[%c0_12, %c0_13] : memref<128x128xf32, #tpu.memory_space<vmem>>, vector<128x128xf32>
      %14 = vector.broadcast %12 : vector<128x1xf32> to vector<128x128xf32>
      %15 = arith.mulf %14, %13 : vector<128x128xf32>
      %c0_14 = arith.constant 0 : index
      %c0_15 = arith.constant 0 : index
      %16 = vector.load %arg5[%c0_14, %c0_15] : memref<1x128xf32, #tpu.memory_space<vmem>>, vector<1x128xf32>
      %17 = vector.broadcast %16 : vector<1x128xf32> to vector<128x128xf32>
      %18 = arith.addf %15, %17 : vector<128x128xf32>
      %cst_16 = arith.constant 0.000000e+00 : f32
      %19 = vector.broadcast %cst_16 : f32 to vector<128x128xf32>
      %20 = arith.maximumf %18, %19 : vector<128x128xf32>
      %21 = arith.truncf %20 : vector<128x128xf32> to vector<128x128xbf16>
      %c0_17 = arith.constant 0 : index
      %c0_18 = arith.constant 0 : index
      %22 = vector.load %arg6[%c0_17, %c0_18] : memref<128x128xbf16, #tpu.memory_space<vmem>>, vector<128x128xbf16>
      tpu.vector_store %arg6[%c0_17, %c0_18], %21 {strides = array<i32>} : memref<128x128xbf16, #tpu.memory_space<vmem>>, vector<128x128xbf16>,
    } else {
    }
    return
  }
  func.func @transform_0(%arg0: i32, %arg1: i32) -> (i32, i32) {
    %c0_i32 = arith.constant 0 : i32
    return %arg0, %arg1 : i32, i32
  }
  func.func @transform_1(%arg0: i32, %arg1: i32) -> (i32, i32) {
    %c0_i32 = arith.constant 0 : i32
    %c0_i32_0 = arith.constant 0 : i32
    return %arg1, %c0_i32 : i32, i32
  }
  func.func @transform_2(%arg0: i32, %arg1: i32) -> (i32, i32) {
    %c0_i32 = arith.constant 0 : i32
    %c0_i32_0 = arith.constant 0 : i32
    return %arg0, %c0_i32 : i32, i32
  }
  func.func @transform_3(%arg0: i32, %arg1: i32) -> (i32, i32) {
    %c0_i32 = arith.constant 0 : i32
    %c0_i32_0 = arith.constant 0 : i32
    %c0_i32_1 = arith.constant 0 : i32
    return %c0_i32, %c0_i32_0 : i32, i32
  }
  func.func @transform_4(%arg0: i32, %arg1: i32) -> (i32, i32) {
    %c0_i32 = arith.constant 0 : i32
    %c0_i32_0 = arith.constant 0 : i32
    return %arg0, %c0_i32 : i32, i32
  }
}

module attributes {stable_mosaic.version = 11 : i64} {
  func.func @_gcn_layer_kernel(%arg0: i32, %arg1: i32, %arg2: memref<128x128xbf16, #tpu.memory_space<vmem>>, %arg3: memref<128x128xbf16, #tpu.memory_space<vmem>>, %arg4: memref<128x1xf32, #tpu.memory_space<vmem>>, %arg5: memref<1x128xf32, #tpu.memory_space<vmem>>, %arg6: memref<128x128xbf16, #tpu.memory_space<vmem>>, %arg7: memref<128x128xf32, #tpu.memory_space<vmem>>) attributes {dimension_semantics = [#tpu.dimension_semantics<parallel>, #tpu.dimension_semantics<arbitrary>], iteration_bounds = array<i64: 1, 1>, scalar_prefetch = 0 : i64, scratch_operands = 1 : i64, tpu.core_type = #tpu.core_type<tc>, window_params = [{transform_indices = @transform_0, window_bounds = array<i64: 128, 128>}, {transform_indices = @transform_1, window_bounds = array<i64: 128, 128>}, {transform_indices = @transform_2, window_bounds = array<i64: 128, 1>}, {pipeline_mode = #tpu.pipeline_mode<synchronous>, transform_indices = @transform_3, window_bounds = array<i64: 1, 128>}, {transform_indices = @transform_4, window_bounds = array<i64: 128, 128>}]} {
    %c0_i32 = arith.constant 0 : i32
    %0 = arith.cmpi eq, %arg1, %c0_i32 : i32
    %1 = arith.extui %0 : i1 to i32
    %c0_i32_0 = arith.constant 0 : i32
    %2 = arith.cmpi ne, %1, %c0_i32_0 : i32
    scf.if %2 {
      %cst_10 = arith.constant 0.000000e+00 : f32
      %12 = vector.broadcast %cst_10 : f32 to vector<128x128xf32>
      %c0_11 = arith.constant 0 : index
      %c0_12 = arith.constant 0 : index
      %13 = vector.load %arg7[%c0_11, %c0_12] : memref<128x128xf32, #tpu.memory_space<vmem>>, vector<128x128xf32>
      tpu.vector_store %arg7[%c0_11, %c0_12], %12 {strides = array<i32>} : memref<128x128xf32, #tpu.memory_space<vmem>>, vector<128x128xf32>,
    } else {
    }
    %c0 = arith.constant 0 : index
    %c0_1 = arith.constant 0 : index
    %3 = vector.load %arg7[%c0, %c0_1] : memref<128x128xf32, #tpu.memory_space<vmem>>, vector<128x128xf32>
    %c0_2 = arith.constant 0 : index
    %c0_3 = arith.constant 0 : index
    %4 = vector.load %arg2[%c0_2, %c0_3] : memref<128x128xbf16, #tpu.memory_space<vmem>>, vector<128x128xbf16>
    %c0_4 = arith.constant 0 : index
    %c0_5 = arith.constant 0 : index
    %5 = vector.load %arg3[%c0_4, %c0_5] : memref<128x128xbf16, #tpu.memory_space<vmem>>, vector<128x128xbf16>
    %cst = arith.constant dense<0.000000e+00> : vector<128x128xf32>
    %6 = tpu.matmul %4, %5, %cst {dimension_numbers = #tpu.dot_dimension_numbers<[1], [0], [0], [1], [0, 0, 1, 1], [], []>} : vector<128x128xbf16>, vector<128x128xbf16>, vector<128x128xf32> -> vector<128x128xf32>
    %7 = arith.addf %3, %6 : vector<128x128xf32>
    %c0_6 = arith.constant 0 : index
    %c0_7 = arith.constant 0 : index
    %8 = vector.load %arg7[%c0_6, %c0_7] : memref<128x128xf32, #tpu.memory_space<vmem>>, vector<128x128xf32>
    tpu.vector_store %arg7[%c0_6, %c0_7], %7 {strides = array<i32>} : memref<128x128xf32, #tpu.memory_space<vmem>>, vector<128x128xf32>,
    %c0_i32_8 = arith.constant 0 : i32
    %9 = arith.cmpi eq, %arg1, %c0_i32_8 : i32
    %10 = arith.extui %9 : i1 to i32
    %c0_i32_9 = arith.constant 0 : i32
    %11 = arith.cmpi ne, %10, %c0_i32_9 : i32
    scf.if %11 {
      %c0_10 = arith.constant 0 : index
      %c0_11 = arith.constant 0 : index
      %12 = vector.load %arg4[%c0_10, %c0_11] : memref<128x1xf32, #tpu.memory_space<vmem>>, vector<128x1xf32>
      %c0_12 = arith.constant 0 : index
      %c0_13 = arith.constant 0 : index
      %13 = vector.load %arg7[%c0_12, %c0_13] : memref<128x128xf32, #tpu.memory_space<vmem>>, vector<128x128xf32>
      %14 = vector.broadcast %12 : vector<128x1xf32> to vector<128x128xf32>
      %15 = arith.mulf %14, %13 : vector<128x128xf32>
      %c0_14 = arith.constant 0 : index
      %c0_15 = arith.constant 0 : index
      %16 = vector.load %arg5[%c0_14, %c0_15] : memref<1x128xf32, #tpu.memory_space<vmem>>, vector<1x128xf32>
      %17 = vector.broadcast %16 : vector<1x128xf32> to vector<128x128xf32>
      %18 = arith.addf %15, %17 : vector<128x128xf32>
      %19 = arith.truncf %18 : vector<128x128xf32> to vector<128x128xbf16>
      %c0_16 = arith.constant 0 : index
      %c0_17 = arith.constant 0 : index
      %20 = vector.load %arg6[%c0_16, %c0_17] : memref<128x128xbf16, #tpu.memory_space<vmem>>, vector<128x128xbf16>
      tpu.vector_store %arg6[%c0_16, %c0_17], %19 {strides = array<i32>} : memref<128x128xbf16, #tpu.memory_space<vmem>>, vector<128x128xbf16>,
    } else {
    }
    return
  }
  func.func @transform_0(%arg0: i32, %arg1: i32) -> (i32, i32) {
    %c0_i32 = arith.constant 0 : i32
    return %arg0, %arg1 : i32, i32
  }
  func.func @transform_1(%arg0: i32, %arg1: i32) -> (i32, i32) {
    %c0_i32 = arith.constant 0 : i32
    %c0_i32_0 = arith.constant 0 : i32
    return %arg1, %c0_i32 : i32, i32
  }
  func.func @transform_2(%arg0: i32, %arg1: i32) -> (i32, i32) {
    %c0_i32 = arith.constant 0 : i32
    %c0_i32_0 = arith.constant 0 : i32
    return %arg0, %c0_i32 : i32, i32
  }
  func.func @transform_3(%arg0: i32, %arg1: i32) -> (i32, i32) {
    %c0_i32 = arith.constant 0 : i32
    %c0_i32_0 = arith.constant 0 : i32
    %c0_i32_1 = arith.constant 0 : i32
    return %c0_i32, %c0_i32_0 : i32, i32
  }
  func.func @transform_4(%arg0: i32, %arg1: i32) -> (i32, i32) {
    %c0_i32 = arith.constant 0 : i32
    %c0_i32_0 = arith.constant 0 : i32
    return %arg0, %c0_i32 : i32, i32
  }
}

module attributes {stable_mosaic.version = 11 : i64} {
  func.func @_edge_mlp_kernel(%arg0: i32, %arg1: memref<128x128xbf16, #tpu.memory_space<vmem>>, %arg2: memref<128x128xbf16, #tpu.memory_space<vmem>>, %arg3: memref<1x128xf32, #tpu.memory_space<vmem>>, %arg4: memref<128x2xbf16, #tpu.memory_space<vmem>>, %arg5: memref<1x2xf32, #tpu.memory_space<vmem>>, %arg6: memref<128x2xf32, #tpu.memory_space<vmem>>) attributes {dimension_semantics = [#tpu.dimension_semantics<parallel>], iteration_bounds = array<i64: 1>, scalar_prefetch = 0 : i64, scratch_operands = 0 : i64, tpu.core_type = #tpu.core_type<tc>, window_params = [{transform_indices = @transform_0, window_bounds = array<i64: 128, 128>}, {pipeline_mode = #tpu.pipeline_mode<synchronous>, transform_indices = @transform_1, window_bounds = array<i64: 128, 128>}, {pipeline_mode = #tpu.pipeline_mode<synchronous>, transform_indices = @transform_2, window_bounds = array<i64: 1, 128>}, {pipeline_mode = #tpu.pipeline_mode<synchronous>, transform_indices = @transform_3, window_bounds = array<i64: 128, 2>}, {pipeline_mode = #tpu.pipeline_mode<synchronous>, transform_indices = @transform_4, window_bounds = array<i64: 1, 2>}, {transform_indices = @transform_5, window_bounds = array<i64: 128, 2>}]} {
    %c0 = arith.constant 0 : index
    %c0_0 = arith.constant 0 : index
    %0 = vector.load %arg1[%c0, %c0_0] : memref<128x128xbf16, #tpu.memory_space<vmem>>, vector<128x128xbf16>
    %c0_1 = arith.constant 0 : index
    %c0_2 = arith.constant 0 : index
    %1 = vector.load %arg2[%c0_1, %c0_2] : memref<128x128xbf16, #tpu.memory_space<vmem>>, vector<128x128xbf16>
    %cst = arith.constant dense<0.000000e+00> : vector<128x128xf32>
    %2 = tpu.matmul %0, %1, %cst {dimension_numbers = #tpu.dot_dimension_numbers<[1], [0], [0], [1], [0, 0, 1, 1], [], []>} : vector<128x128xbf16>, vector<128x128xbf16>, vector<128x128xf32> -> vector<128x128xf32>
    %c0_3 = arith.constant 0 : index
    %c0_4 = arith.constant 0 : index
    %3 = vector.load %arg3[%c0_3, %c0_4] : memref<1x128xf32, #tpu.memory_space<vmem>>, vector<1x128xf32>
    %4 = vector.broadcast %3 : vector<1x128xf32> to vector<128x128xf32>
    %5 = arith.addf %2, %4 : vector<128x128xf32>
    %cst_5 = arith.constant 0.000000e+00 : f32
    %6 = vector.broadcast %cst_5 : f32 to vector<128x128xf32>
    %7 = arith.maximumf %5, %6 : vector<128x128xf32>
    %8 = arith.truncf %7 : vector<128x128xf32> to vector<128x128xbf16>
    %c0_6 = arith.constant 0 : index
    %c0_7 = arith.constant 0 : index
    %9 = vector.load %arg4[%c0_6, %c0_7] : memref<128x2xbf16, #tpu.memory_space<vmem>>, vector<128x2xbf16>
    %cst_8 = arith.constant dense<0.000000e+00> : vector<128x2xf32>
    %10 = tpu.matmul %8, %9, %cst_8 {dimension_numbers = #tpu.dot_dimension_numbers<[1], [0], [0], [1], [0, 0, 1, 1], [], []>} : vector<128x128xbf16>, vector<128x2xbf16>, vector<128x2xf32> -> vector<128x2xf32>
    %c0_9 = arith.constant 0 : index
    %c0_10 = arith.constant 0 : index
    %11 = vector.load %arg5[%c0_9, %c0_10] : memref<1x2xf32, #tpu.memory_space<vmem>>, vector<1x2xf32>
    %12 = vector.broadcast %11 : vector<1x2xf32> to vector<128x2xf32>
    %13 = arith.addf %10, %12 : vector<128x2xf32>
    %c0_11 = arith.constant 0 : index
    %c0_12 = arith.constant 0 : index
    %14 = vector.load %arg6[%c0_11, %c0_12] : memref<128x2xf32, #tpu.memory_space<vmem>>, vector<128x2xf32>
    tpu.vector_store %arg6[%c0_11, %c0_12], %13 {strides = array<i32>} : memref<128x2xf32, #tpu.memory_space<vmem>>, vector<128x2xf32>,
    return
  }
  func.func @transform_0(%arg0: i32) -> (i32, i32) {
    %c0_i32 = arith.constant 0 : i32
    %c0_i32_0 = arith.constant 0 : i32
    return %arg0, %c0_i32 : i32, i32
  }
  func.func @transform_1(%arg0: i32) -> (i32, i32) {
    %c0_i32 = arith.constant 0 : i32
    %c0_i32_0 = arith.constant 0 : i32
    %c0_i32_1 = arith.constant 0 : i32
    return %c0_i32, %c0_i32_0 : i32, i32
  }
  func.func @transform_2(%arg0: i32) -> (i32, i32) {
    %c0_i32 = arith.constant 0 : i32
    %c0_i32_0 = arith.constant 0 : i32
    %c0_i32_1 = arith.constant 0 : i32
    return %c0_i32, %c0_i32_0 : i32, i32
  }
  func.func @transform_3(%arg0: i32) -> (i32, i32) {
    %c0_i32 = arith.constant 0 : i32
    %c0_i32_0 = arith.constant 0 : i32
    %c0_i32_1 = arith.constant 0 : i32
    return %c0_i32, %c0_i32_0 : i32, i32
  }
  func.func @transform_4(%arg0: i32) -> (i32, i32) {
    %c0_i32 = arith.constant 0 : i32
    %c0_i32_0 = arith.constant 0 : i32
    %c0_i32_1 = arith.constant 0 : i32
    return %c0_i32, %c0_i32_0 : i32, i32
  }
  func.func @transform_5(%arg0: i32) -> (i32, i32) {
    %c0_i32 = arith.constant 0 : i32
    %c0_i32_0 = arith.constant 0 : i32
    return %arg0, %c0_i32 : i32, i32
  }
}

</mosaic_0001>

<llo_original>
// kernel: edge_gcn_forward.3
$region0: #{edge_gcn_forward.3}
  #allocation0 [shape = 'u32[]', space=smem, size = 0x4, offset = 0x4, fixed_abs, tag = 'smem constant byte address 0x4 - core index']
  #allocation1 [shape = 'u32[144,128]{1,0:T(1,128)}', space=vmem, size = 0x12000, scoped, tag = 'internal scratch']
  #allocation2 [shape = 'f32[128,128]{1,0:T(8,128)}', space=vmem, size = 0x10000, scoped, tag = 'scratch operand']
  %s0 = inlined_call_operand.vmem [shape: bf16[128,128], index: 0, kind: input, shape index: {}]
  %s1 = inlined_call_operand.vmem [shape: bf16[128,128], index: 1, kind: input, shape index: {}]
  %s2 = inlined_call_operand.vmem [shape: f32[128,1], index: 2, kind: input, shape index: {}]
  %s3 = inlined_call_operand.vmem [shape: f32[1,128], index: 3, kind: input, shape index: {}]
  %s4 = inlined_call_operand.vmem [shape: bf16[128,128], index: 4, kind: output, shape index: {}]
  %s5 = sld [smem:[#allocation0]]
  $region34: #{edge_gcn_forward.3} parent=0
    _
  %s7 = ssub.s32 1, %s5
  %s8 = scalar_select 0, %s7, %s5
  // Predicated region
  $region2: #{edge_gcn_forward.3} parent=0 // pred_check
    _
  $region3: #{edge_gcn_forward.3} parent=0 // pred_check_branch
    %10 = sbr.rel (0) target = $region5
  $region4: #{edge_gcn_forward.3} parent=0 // pred_region
    _
  $region5: #{edge_gcn_forward.3} parent=0 // pred_fallthru
    _
  // Predicated region
  $region6: #{edge_gcn_forward.3} parent=0 // pred_check
    _
  $region7: #{edge_gcn_forward.3} parent=0 // pred_check_branch
    %12 = sbr.rel (0) target = $region9
  $region8: #{edge_gcn_forward.3} parent=0 // pred_region
    _
  $region9: #{edge_gcn_forward.3} parent=0 // pred_fallthru
    _
  // Predicated region
  $region10: #{edge_gcn_forward.3} parent=0 // pred_check
    _
  $region11: #{edge_gcn_forward.3} parent=0 // pred_check_branch
    %14 = sbr.rel (0) target = $region13
  $region12: #{edge_gcn_forward.3} parent=0 // pred_region
    _
  $region13: #{edge_gcn_forward.3} parent=0 // pred_fallthru
    _
  // Predicated region
  $region14: #{edge_gcn_forward.3} parent=0 // pred_check
    _
  $region15: #{edge_gcn_forward.3} parent=0 // pred_check_branch
    %16 = sbr.rel (0) target = $region17
  $region16: #{edge_gcn_forward.3} parent=0 // pred_region
    _
  $region17: #{edge_gcn_forward.3} parent=0 // pred_fallthru
    _
  %p18 = scmp.eq.s32.totalorder 0, 0
  // Predicated region
  $region18: #{edge_gcn_forward.3} parent=0 // pred_check
    %p19 = pneg %p18
  $region19: #{edge_gcn_forward.3} parent=0 // pred_check_branch
    %21 = sbr.rel (%p19) target = $region21
  $region20: #{edge_gcn_forward.3} parent=0 // pred_region
    %22 = vst [vmem:[#allocation2] sm:$0xff] 0.0
    %23 = vst [vmem:[#allocation2 + $0x8] sm:$0xff] 0.0
    %24 = vst [vmem:[#allocation2 + $0x10] sm:$0xff] 0.0
    %25 = vst [vmem:[#allocation2 + $0x18] sm:$0xff] 0.0
    %26 = vst [vmem:[#allocation2 + $0x20] sm:$0xff] 0.0
    %27 = vst [vmem:[#allocation2 + $0x28] sm:$0xff] 0.0
    %28 = vst [vmem:[#allocation2 + $0x30] sm:$0xff] 0.0
    %29 = vst [vmem:[#allocation2 + $0x38] sm:$0xff] 0.0
    %30 = vst [vmem:[#allocation2 + $0x40] sm:$0xff] 0.0
    %31 = vst [vmem:[#allocation2 + $0x48] sm:$0xff] 0.0
    %32 = vst [vmem:[#allocation2 + $0x50] sm:$0xff] 0.0
    %33 = vst [vmem:[#allocation2 + $0x58] sm:$0xff] 0.0
    %34 = vst [vmem:[#allocation2 + $0x60] sm:$0xff] 0.0
    %35 = vst [vmem:[#allocation2 + $0x68] sm:$0xff] 0.0
    %36 = vst [vmem:[#allocation2 + $0x70] sm:$0xff] 0.0
    %37 = vst [vmem:[#allocation2 + $0x78] sm:$0xff] 0.0
  $region21: #{edge_gcn_forward.3} parent=0 // pred_fallthru
    _
  %v38 = vld [vmem:[#allocation2] sm:$0xff]
  %v39 = vld [vmem:[#allocation2 + $0x8] sm:$0xff]
  %v40 = vld [vmem:[#allocation2 + $0x10] sm:$0xff]
  %v41 = vld [vmem:[#allocation2 + $0x18] sm:$0xff]
  %v42 = vld [vmem:[#allocation2 + $0x20] sm:$0xff]
  %v43 = vld [vmem:[#allocation2 + $0x28] sm:$0xff]
  %v44 = vld [vmem:[#allocation2 + $0x30] sm:$0xff]
  %v45 = vld [vmem:[#allocation2 + $0x38] sm:$0xff]
  %v46 = vld [vmem:[#allocation2 + $0x40] sm:$0xff]
  %v47 = vld [vmem:[#allocation2 + $0x48] sm:$0xff]
  %v48 = vld [vmem:[#allocation2 + $0x50] sm:$0xff]
  %v49 = vld [vmem:[#allocation2 + $0x58] sm:$0xff]
  %v50 = vld [vmem:[#allocation2 + $0x60] sm:$0xff]
  %v51 = vld [vmem:[#allocation2 + $0x68] sm:$0xff]
  %v52 = vld [vmem:[#allocation2 + $0x70] sm:$0xff]
  %v53 = vld [vmem:[#allocation2 + $0x78] sm:$0xff]
  %v54 = vld [vmem:[%s0] sm:$0xf]
  %v55 = vld [vmem:[%s0 + $0x4] sm:$0xf]
  %v56 = vld [vmem:[%s0 + $0x8] sm:$0xf]
  %v57 = vld [vmem:[%s0 + $0xc] sm:$0xf]
  %v58 = vld [vmem:[%s0 + $0x10] sm:$0xf]
  %v59 = vld [vmem:[%s0 + $0x14] sm:$0xf]
  %v60 = vld [vmem:[%s0 + $0x18] sm:$0xf]
  %v61 = vld [vmem:[%s0 + $0x1c] sm:$0xf]
  %v62 = vld [vmem:[%s0 + $0x20] sm:$0xf]
  %v63 = vld [vmem:[%s0 + $0x24] sm:$0xf]
  %v64 = vld [vmem:[%s0 + $0x28] sm:$0xf]
  %v65 = vld [vmem:[%s0 + $0x2c] sm:$0xf]
  %v66 = vld [vmem:[%s0 + $0x30] sm:$0xf]
  %v67 = vld [vmem:[%s0 + $0x34] sm:$0xf]
  %v68 = vld [vmem:[%s0 + $0x38] sm:$0xf]
  %v69 = vld [vmem:[%s0 + $0x3c] sm:$0xf]
  %v70 = vld [vmem:[%s1] sm:$0xf]
  %v71 = vld [vmem:[%s1 + $0x4] sm:$0xf]
  %v72 = vld [vmem:[%s1 + $0x8] sm:$0xf]
  %v73 = vld [vmem:[%s1 + $0xc] sm:$0xf]
  %v74 = vld [vmem:[%s1 + $0x10] sm:$0xf]
  %v75 = vld [vmem:[%s1 + $0x14] sm:$0xf]
  %v76 = vld [vmem:[%s1 + $0x18] sm:$0xf]
  %v77 = vld [vmem:[%s1 + $0x1c] sm:$0xf]
  %v78 = vld [vmem:[%s1 + $0x20] sm:$0xf]
  %v79 = vld [vmem:[%s1 + $0x24] sm:$0xf]
  %v80 = vld [vmem:[%s1 + $0x28] sm:$0xf]
  %v81 = vld [vmem:[%s1 + $0x2c] sm:$0xf]
  %v82 = vld [vmem:[%s1 + $0x30] sm:$0xf]
  %v83 = vld [vmem:[%s1 + $0x34] sm:$0xf]
  %v84 = vld [vmem:[%s1 + $0x38] sm:$0xf]
  %v85 = vld [vmem:[%s1 + $0x3c] sm:$0xf]
  %v102 = vunpack.c.l.b16 %v54
  %v103 = vunpack.c.l.b16 %v55
  %v104 = vunpack.c.l.b16 %v56
  %v105 = vunpack.c.l.b16 %v57
  %v106 = vunpack.c.l.b16 %v58
  %v107 = vunpack.c.l.b16 %v59
  %v108 = vunpack.c.l.b16 %v60
  %v109 = vunpack.c.l.b16 %v61
  %v110 = vunpack.c.l.b16 %v62
  %v111 = vunpack.c.l.b16 %v63
  %v112 = vunpack.c.l.b16 %v64
  %v113 = vunpack.c.l.b16 %v65
  %v114 = vunpack.c.l.b16 %v66
  %v115 = vunpack.c.l.b16 %v67
  %v116 = vunpack.c.l.b16 %v68
  %v117 = vunpack.c.l.b16 %v69
  %v118 = vpack.c.b16 %v103, %v102
  %v119 = vpack.c.b16 %v105, %v104
  %v120 = vpack.c.b16 %v107, %v106
  %v121 = vpack.c.b16 %v109, %v108
  %v122 = vpack.c.b16 %v111, %v110
  %v123 = vpack.c.b16 %v113, %v112
  %v124 = vpack.c.b16 %v115, %v114
  %v125 = vpack.c.b16 %v117, %v116
  %v150 = vunpack.c.l.b16 %v70
  %v151 = vunpack.c.l.b16 %v71
  %v152 = vunpack.c.l.b16 %v72
  %v153 = vunpack.c.l.b16 %v73
  %v154 = vunpack.c.l.b16 %v74
  %v155 = vunpack.c.l.b16 %v75
  %v156 = vunpack.c.l.b16 %v76
  %v157 = vunpack.c.l.b16 %v77
  %v158 = vunpack.c.l.b16 %v78
  %v159 = vunpack.c.l.b16 %v79
  %v160 = vunpack.c.l.b16 %v80
  %v161 = vunpack.c.l.b16 %v81
  %v162 = vunpack.c.l.b16 %v82
  %v163 = vunpack.c.l.b16 %v83
  %v164 = vunpack.c.l.b16 %v84
  %v165 = vunpack.c.l.b16 %v85
  %v166 = vpack.c.b16 %v151, %v150
  %v167 = vpack.c.b16 %v153, %v152
  %v168 = vpack.c.b16 %v155, %v154
  %v169 = vpack.c.b16 %v157, %v156
  %v170 = vpack.c.b16 %v159, %v158
  %v171 = vpack.c.b16 %v161, %v160
  %v172 = vpack.c.b16 %v163, %v162
  %v173 = vpack.c.b16 %v165, %v164
  %182 = vmatprep.subr.bf16.mxu0 0
  %183 = vmatpush1.bf16.msra.mxu0 %v166
  %184 = vmatprep.subr.bf16.mxu0 0
  %185 = vmatpush1.bf16.msra.mxu0 %v167
  %186 = vmatprep.subr.bf16.mxu0 0
  %187 = vmatpush1.bf16.msra.mxu0 %v168
  %188 = vmatprep.subr.bf16.mxu0 0
  %189 = vmatpush1.bf16.msra.mxu0 %v169
  %190 = vmatprep.subr.bf16.mxu0 0
  %191 = vmatpush1.bf16.msra.mxu0 %v170
  %192 = vmatprep.subr.bf16.mxu0 0
  %193 = vmatpush1.bf16.msra.mxu0 %v171
  %194 = vmatprep.subr.bf16.mxu0 0
  %195 = vmatpush1.bf16.msra.mxu0 %v172
  %196 = vmatprep.subr.bf16.mxu0 0
  %197 = vmatpush1.bf16.msra.mxu0 %v173
  %198 = vmatprep.subr.bf16.mxu0 0
  %199 = vmatpush1.bf16.msra.mxu0 0
  %200 = vmatprep.subr.bf16.mxu0 0
  %201 = vmatpush1.bf16.msra.mxu0 0
  %202 = vmatprep.subr.bf16.mxu0 0
  %203 = vmatpush1.bf16.msra.mxu0 0
  %204 = vmatprep.subr.bf16.mxu0 0
  %205 = vmatpush1.bf16.msra.mxu0 0
  %206 = vmatprep.subr.bf16.mxu0 0
  %207 = vmatpush1.bf16.msra.mxu0 0
  %208 = vmatprep.subr.bf16.mxu0 0
  %209 = vmatpush1.bf16.msra.mxu0 0
  %210 = vmatprep.subr.bf16.mxu0 0
  %211 = vmatpush1.bf16.msra.mxu0 0
  %212 = vmatprep.subr.bf16.mxu0 0
  %213 = vmatpush1.bf16.msra.mxu0 0
  %214 = vmatprep.mubr.bf16.mxu0 0
  %215 = vmatmul.mubr.bf16.gmra.mrb[0].mxu0 %v118
  %v216 = vpop.f32.mrb[0].mxu0
  %v217 = vadd.f32 0.0, %v216
  %v218 = vpop.f32.mrb[0].mxu0
  %v219 = vpop.f32.mrb[0].mxu0
  %v220 = vadd.f32 0.0, %v219
  %v221 = vpop.f32.mrb[0].mxu0
  %222 = vmatprep.mubr.bf16.mxu0 0
  %223 = vmatmul.mubr.bf16.gmra.mrb[0].mxu0 %v119
  %v224 = vpop.f32.mrb[0].mxu0
  %v225 = vadd.f32 0.0, %v224
  %v226 = vpop.f32.mrb[0].mxu0
  %v227 = vpop.f32.mrb[0].mxu0
  %v228 = vadd.f32 0.0, %v227
  %v229 = vpop.f32.mrb[0].mxu0
  %230 = vmatprep.mubr.bf16.mxu0 0
  %231 = vmatmul.mubr.bf16.gmra.mrb[0].mxu0 %v120
  %v232 = vpop.f32.mrb[0].mxu0
  %v233 = vadd.f32 0.0, %v232
  %v234 = vpop.f32.mrb[0].mxu0
  %v235 = vpop.f32.mrb[0].mxu0
  %v236 = vadd.f32 0.0, %v235
  %v237 = vpop.f32.mrb[0].mxu0
  %238 = vmatprep.mubr.bf16.mxu0 0
  %239 = vmatmul.mubr.bf16.gmra.mrb[0].mxu0 %v121
  %v240 = vpop.f32.mrb[0].mxu0
  %v241 = vadd.f32 0.0, %v240
  %v242 = vpop.f32.mrb[0].mxu0
  %v243 = vpop.f32.mrb[0].mxu0
  %v244 = vadd.f32 0.0, %v243
  %v245 = vpop.f32.mrb[0].mxu0
  %246 = vmatprep.mubr.bf16.mxu0 0
  %247 = vmatmul.mubr.bf16.gmra.mrb[0].mxu0 %v122
  %v248 = vpop.f32.mrb[0].mxu0
  %v249 = vadd.f32 0.0, %v248
  %v250 = vpop.f32.mrb[0].mxu0
  %v251 = vpop.f32.mrb[0].mxu0
  %v252 = vadd.f32 0.0, %v251
  %v253 = vpop.f32.mrb[0].mxu0
  %254 = vmatprep.mubr.bf16.mxu0 0
  %255 = vmatmul.mubr.bf16.gmra.mrb[0].mxu0 %v123
  %v256 = vpop.f32.mrb[0].mxu0
  %v257 = vadd.f32 0.0, %v256
  %v258 = vpop.f32.mrb[0].mxu0
  %v259 = vpop.f32.mrb[0].mxu0
  %v260 = vadd.f32 0.0, %v259
  %v261 = vpop.f32.mrb[0].mxu0
  %262 = vmatprep.mubr.bf16.mxu0 0
  %263 = vmatmul.mubr.bf16.gmra.mrb[0].mxu0 %v124
  %v264 = vpop.f32.mrb[0].mxu0
  %v265 = vadd.f32 0.0, %v264
  %v266 = vpop.f32.mrb[0].mxu0
  %v267 = vpop.f32.mrb[0].mxu0
  %v268 = vadd.f32 0.0, %v267
  %v269 = vpop.f32.mrb[0].mxu0
  %270 = vmatprep.mubr.bf16.mxu0 0
  %271 = vmatmul.mubr.bf16.gmra.mrb[0].mxu0 %v125
  %v272 = vpop.f32.mrb[0].mxu0
  %v273 = vadd.f32 0.0, %v272
  %v274 = vpop.f32.mrb[0].mxu0
  %v275 = vpop.f32.mrb[0].mxu0
  %v276 = vadd.f32 0.0, %v275
  %v277 = vpop.f32.mrb[0].mxu0
  %278 = vdwg.mxu0
  %v279 = vadd.f32 %v38, %v217
  %v280 = vadd.f32 %v39, %v220
  %v281 = vadd.f32 %v40, %v225
  %v282 = vadd.f32 %v41, %v228
  %v283 = vadd.f32 %v42, %v233
  %v284 = vadd.f32 %v43, %v236
  %v285 = vadd.f32 %v44, %v241
  %v286 = vadd.f32 %v45, %v244
  %v287 = vadd.f32 %v46, %v249
  %v288 = vadd.f32 %v47, %v252
  %v289 = vadd.f32 %v48, %v257
  %v290 = vadd.f32 %v49, %v260
  %v291 = vadd.f32 %v50, %v265
  %v292 = vadd.f32 %v51, %v268
  %v293 = vadd.f32 %v52, %v273
  %v294 = vadd.f32 %v53, %v276
  %295 = vst [vmem:[#allocation2] sm:$0xff] %v279
  %296 = vst [vmem:[#allocation2 + $0x8] sm:$0xff] %v280
  %297 = vst [vmem:[#allocation2 + $0x10] sm:$0xff] %v281
  %298 = vst [vmem:[#allocation2 + $0x18] sm:$0xff] %v282
  %299 = vst [vmem:[#allocation2 + $0x20] sm:$0xff] %v283
  %300 = vst [vmem:[#allocation2 + $0x28] sm:$0xff] %v284
  %301 = vst [vmem:[#allocation2 + $0x30] sm:$0xff] %v285
  %302 = vst [vmem:[#allocation2 + $0x38] sm:$0xff] %v286
  %303 = vst [vmem:[#allocation2 + $0x40] sm:$0xff] %v287
  %304 = vst [vmem:[#allocation2 + $0x48] sm:$0xff] %v288
  %305 = vst [vmem:[#allocation2 + $0x50] sm:$0xff] %v289
  %306 = vst [vmem:[#allocation2 + $0x58] sm:$0xff] %v290
  %307 = vst [vmem:[#allocation2 + $0x60] sm:$0xff] %v291
  %308 = vst [vmem:[#allocation2 + $0x68] sm:$0xff] %v292
  %309 = vst [vmem:[#allocation2 + $0x70] sm:$0xff] %v293
  %310 = vst [vmem:[#allocation2 + $0x78] sm:$0xff] %v294
  // Predicated region
  $region22: #{edge_gcn_forward.3} parent=0 // pred_check
    %p311 = pneg %p18
  $region23: #{edge_gcn_forward.3} parent=0 // pred_check_branch
    %313 = sbr.rel (%p311) target = $region25
  $region24: #{edge_gcn_forward.3} parent=0 // pred_region
    %v314 = vld [vmem:[%s2] sm:$0xff]
    %v315 = vld [vmem:[%s2 + $0x8] sm:$0xff]
    %v316 = vld [vmem:[%s2 + $0x10] sm:$0xff]
    %v317 = vld [vmem:[%s2 + $0x18] sm:$0xff]
    %v318 = vld [vmem:[%s2 + $0x20] sm:$0xff]
    %v319 = vld [vmem:[%s2 + $0x28] sm:$0xff]
    %v320 = vld [vmem:[%s2 + $0x30] sm:$0xff]
    %v321 = vld [vmem:[%s2 + $0x38] sm:$0xff]
    %v322 = vld [vmem:[%s2 + $0x40] sm:$0xff]
    %v323 = vld [vmem:[%s2 + $0x48] sm:$0xff]
    %v324 = vld [vmem:[%s2 + $0x50] sm:$0xff]
    %v325 = vld [vmem:[%s2 + $0x58] sm:$0xff]
    %v326 = vld [vmem:[%s2 + $0x60] sm:$0xff]
    %v327 = vld [vmem:[%s2 + $0x68] sm:$0xff]
    %v328 = vld [vmem:[%s2 + $0x70] sm:$0xff]
    %v329 = vld [vmem:[%s2 + $0x78] sm:$0xff]
    %v330 = vld [vmem:[#allocation2] sm:$0xff]
    %v331 = vld [vmem:[#allocation2 + $0x8] sm:$0xff]
    %v332 = vld [vmem:[#allocation2 + $0x10] sm:$0xff]
    %v333 = vld [vmem:[#allocation2 + $0x18] sm:$0xff]
    %v334 = vld [vmem:[#allocation2 + $0x20] sm:$0xff]
    %v335 = vld [vmem:[#allocation2 + $0x28] sm:$0xff]
    %v336 = vld [vmem:[#allocation2 + $0x30] sm:$0xff]
    %v337 = vld [vmem:[#allocation2 + $0x38] sm:$0xff]
    %v338 = vld [vmem:[#allocation2 + $0x40] sm:$0xff]
    %v339 = vld [vmem:[#allocation2 + $0x48] sm:$0xff]
    %v340 = vld [vmem:[#allocation2 + $0x50] sm:$0xff]
    %v341 = vld [vmem:[#allocation2 + $0x58] sm:$0xff]
    %v342 = vld [vmem:[#allocation2 + $0x60] sm:$0xff]
    %v343 = vld [vmem:[#allocation2 + $0x68] sm:$0xff]
    %v344 = vld [vmem:[#allocation2 + $0x70] sm:$0xff]
    %v345 = vld [vmem:[#allocation2 + $0x78] sm:$0xff]
    %347 = vset.pattern.permute.xlu0 0
    %348 = vperm.xlu0 %347, %v314
    %v349 = vpop.permute.xlu0 %348
    %352 = vset.pattern.permute.xlu0 0
    %353 = vperm.xlu0 %352, %v315
    %v354 = vpop.permute.xlu0 %353
    %357 = vset.pattern.permute.xlu0 0
    %358 = vperm.xlu0 %357, %v316
    %v359 = vpop.permute.xlu0 %358
    %362 = vset.pattern.permute.xlu0 0
    %363 = vperm.xlu0 %362, %v317
    %v364 = vpop.permute.xlu0 %363
    %367 = vset.pattern.permute.xlu0 0
    %368 = vperm.xlu0 %367, %v318
    %v369 = vpop.permute.xlu0 %368
    %372 = vset.pattern.permute.xlu0 0
    %373 = vperm.xlu0 %372, %v319
    %v374 = vpop.permute.xlu0 %373
    %377 = vset.pattern.permute.xlu0 0
    %378 = vperm.xlu0 %377, %v320
    %v379 = vpop.permute.xlu0 %378
    %382 = vset.pattern.permute.xlu0 0
    %383 = vperm.xlu0 %382, %v321
    %v384 = vpop.permute.xlu0 %383
    %387 = vset.pattern.permute.xlu0 0
    %388 = vperm.xlu0 %387, %v322
    %v389 = vpop.permute.xlu0 %388
    %392 = vset.pattern.permute.xlu0 0
    %393 = vperm.xlu0 %392, %v323
    %v394 = vpop.permute.xlu0 %393
    %397 = vset.pattern.permute.xlu0 0
    %398 = vperm.xlu0 %397, %v324
    %v399 = vpop.permute.xlu0 %398
    %402 = vset.pattern.permute.xlu0 0
    %403 = vperm.xlu0 %402, %v325
    %v404 = vpop.permute.xlu0 %403
    %407 = vset.pattern.permute.xlu0 0
    %408 = vperm.xlu0 %407, %v326
    %v409 = vpop.permute.xlu0 %408
    %412 = vset.pattern.permute.xlu0 0
    %413 = vperm.xlu0 %412, %v327
    %v414 = vpop.permute.xlu0 %413
    %417 = vset.pattern.permute.xlu0 0
    %418 = vperm.xlu0 %417, %v328
    %v419 = vpop.permute.xlu0 %418
    %422 = vset.pattern.permute.xlu0 0
    %423 = vperm.xlu0 %422, %v329
    %v424 = vpop.permute.xlu0 %423
    %v426 = vmul.f32 %v349, %v330
    %v427 = vmul.f32 %v354, %v331
    %v428 = vmul.f32 %v359, %v332
    %v429 = vmul.f32 %v364, %v333
    %v430 = vmul.f32 %v369, %v334
    %v431 = vmul.f32 %v374, %v335
    %v432 = vmul.f32 %v379, %v336
    %v433 = vmul.f32 %v384, %v337
    %v434 = vmul.f32 %v389, %v338
    %v435 = vmul.f32 %v394, %v339
    %v436 = vmul.f32 %v399, %v340
    %v437 = vmul.f32 %v404, %v341
    %v438 = vmul.f32 %v409, %v342
    %v439 = vmul.f32 %v414, %v343
    %v440 = vmul.f32 %v419, %v344
    %v441 = vmul.f32 %v424, %v345
    %v442 = vld [vmem:[%s3] sm:$0x1]
    %v444 = vlaneseq
    %v445 = vshrl.u32 %v444, 7
    %v446 = vsub.s32 0, %v445
    %v447 = vrot.slane %v442, %v446
    %v449 = vadd.f32 %v426, %v447
    %v450 = vadd.f32 %v427, %v447
    %v451 = vadd.f32 %v428, %v447
    %v452 = vadd.f32 %v429, %v447
    %v453 = vadd.f32 %v430, %v447
    %v454 = vadd.f32 %v431, %v447
    %v455 = vadd.f32 %v432, %v447
    %v456 = vadd.f32 %v433, %v447
    %v457 = vadd.f32 %v434, %v447
    %v458 = vadd.f32 %v435, %v447
    %v459 = vadd.f32 %v436, %v447
    %v460 = vadd.f32 %v437, %v447
    %v461 = vadd.f32 %v438, %v447
    %v462 = vadd.f32 %v439, %v447
    %v463 = vadd.f32 %v440, %v447
    %v464 = vadd.f32 %v441, %v447
    %v465 = vmax.f32 %v449, 0.0
    %v466 = vmax.f32 %v450, 0.0
    %v467 = vmax.f32 %v451, 0.0
    %v468 = vmax.f32 %v452, 0.0
    %v469 = vmax.f32 %v453, 0.0
    %v470 = vmax.f32 %v454, 0.0
    %v471 = vmax.f32 %v455, 0.0
    %v472 = vmax.f32 %v456, 0.0
    %v473 = vmax.f32 %v457, 0.0
    %v474 = vmax.f32 %v458, 0.0
    %v475 = vmax.f32 %v459, 0.0
    %v476 = vmax.f32 %v460, 0.0
    %v477 = vmax.f32 %v461, 0.0
    %v478 = vmax.f32 %v462, 0.0
    %v479 = vmax.f32 %v463, 0.0
    %v480 = vmax.f32 %v464, 0.0
    %v481 = vpack.c.bf16 %v466, %v465
    %v482 = vpack.c.bf16 %v468, %v467
    %v483 = vpack.c.bf16 %v470, %v469
    %v484 = vpack.c.bf16 %v472, %v471
    %v485 = vpack.c.bf16 %v474, %v473
    %v486 = vpack.c.bf16 %v476, %v475
    %v487 = vpack.c.bf16 %v478, %v477
    %v488 = vpack.c.bf16 %v480, %v479
    %489 = vst [vmem:[%s4] sm:$0xff] %v481
    %490 = vst [vmem:[%s4 + $0x8] sm:$0xff] %v482
    %491 = vst [vmem:[%s4 + $0x10] sm:$0xff] %v483
    %492 = vst [vmem:[%s4 + $0x18] sm:$0xff] %v484
    %493 = vst [vmem:[%s4 + $0x20] sm:$0xff] %v485
    %494 = vst [vmem:[%s4 + $0x28] sm:$0xff] %v486
    %495 = vst [vmem:[%s4 + $0x30] sm:$0xff] %v487
    %496 = vst [vmem:[%s4 + $0x38] sm:$0xff] %v488
  $region25: #{edge_gcn_forward.3} parent=0 // pred_fallthru
    _
  // Predicated region
  $region26: #{edge_gcn_forward.3} parent=0 // pred_check
    _
  $region27: #{edge_gcn_forward.3} parent=0 // pred_check_branch
    %498 = sbr.rel (0) target = $region29
  $region28: #{edge_gcn_forward.3} parent=0 // pred_region
    _
  $region29: #{edge_gcn_forward.3} parent=0 // pred_fallthru
    _
  // Predicated region
  $region30: #{edge_gcn_forward.3} parent=0 // pred_check
    _
  $region31: #{edge_gcn_forward.3} parent=0 // pred_check_branch
    %500 = sbr.rel (0) target = $region33
  $region32: #{edge_gcn_forward.3} parent=0 // pred_region
    _
  $region33: #{edge_gcn_forward.3} parent=0 // pred_fallthru
    _

// kernel: edge_gcn_forward.4
$region0: #{edge_gcn_forward.4}
  #allocation0 [shape = 'u32[]', space=smem, size = 0x4, offset = 0x4, fixed_abs, tag = 'smem constant byte address 0x4 - core index']
  #allocation1 [shape = 'u32[144,128]{1,0:T(1,128)}', space=vmem, size = 0x12000, scoped, tag = 'internal scratch']
  #allocation2 [shape = 'f32[128,128]{1,0:T(8,128)}', space=vmem, size = 0x10000, scoped, tag = 'scratch operand']
  %s0 = inlined_call_operand.vmem [shape: bf16[128,128], index: 0, kind: input, shape index: {}]
  %s1 = inlined_call_operand.vmem [shape: bf16[128,128], index: 1, kind: input, shape index: {}]
  %s2 = inlined_call_operand.vmem [shape: f32[128,1], index: 2, kind: input, shape index: {}]
  %s3 = inlined_call_operand.vmem [shape: f32[1,128], index: 3, kind: input, shape index: {}]
  %s4 = inlined_call_operand.vmem [shape: bf16[128,128], index: 4, kind: output, shape index: {}]
  %s5 = sld [smem:[#allocation0]]
  $region34: #{edge_gcn_forward.4} parent=0
    _
  %s7 = ssub.s32 1, %s5
  %s8 = scalar_select 0, %s7, %s5
  // Predicated region
  $region2: #{edge_gcn_forward.4} parent=0 // pred_check
    _
  $region3: #{edge_gcn_forward.4} parent=0 // pred_check_branch
    %10 = sbr.rel (0) target = $region5
  $region4: #{edge_gcn_forward.4} parent=0 // pred_region
    _
  $region5: #{edge_gcn_forward.4} parent=0 // pred_fallthru
    _
  // Predicated region
  $region6: #{edge_gcn_forward.4} parent=0 // pred_check
    _
  $region7: #{edge_gcn_forward.4} parent=0 // pred_check_branch
    %12 = sbr.rel (0) target = $region9
  $region8: #{edge_gcn_forward.4} parent=0 // pred_region
    _
  $region9: #{edge_gcn_forward.4} parent=0 // pred_fallthru
    _
  // Predicated region
  $region10: #{edge_gcn_forward.4} parent=0 // pred_check
    _
  $region11: #{edge_gcn_forward.4} parent=0 // pred_check_branch
    %14 = sbr.rel (0) target = $region13
  $region12: #{edge_gcn_forward.4} parent=0 // pred_region
    _
  $region13: #{edge_gcn_forward.4} parent=0 // pred_fallthru
    _
  // Predicated region
  $region14: #{edge_gcn_forward.4} parent=0 // pred_check
    _
  $region15: #{edge_gcn_forward.4} parent=0 // pred_check_branch
    %16 = sbr.rel (0) target = $region17
  $region16: #{edge_gcn_forward.4} parent=0 // pred_region
    _
  $region17: #{edge_gcn_forward.4} parent=0 // pred_fallthru
    _
  %p18 = scmp.eq.s32.totalorder 0, 0
  // Predicated region
  $region18: #{edge_gcn_forward.4} parent=0 // pred_check
    %p19 = pneg %p18
  $region19: #{edge_gcn_forward.4} parent=0 // pred_check_branch
    %21 = sbr.rel (%p19) target = $region21
  $region20: #{edge_gcn_forward.4} parent=0 // pred_region
    %22 = vst [vmem:[#allocation2] sm:$0xff] 0.0
    %23 = vst [vmem:[#allocation2 + $0x8] sm:$0xff] 0.0
    %24 = vst [vmem:[#allocation2 + $0x10] sm:$0xff] 0.0
    %25 = vst [vmem:[#allocation2 + $0x18] sm:$0xff] 0.0
    %26 = vst [vmem:[#allocation2 + $0x20] sm:$0xff] 0.0
    %27 = vst [vmem:[#allocation2 + $0x28] sm:$0xff] 0.0
    %28 = vst [vmem:[#allocation2 + $0x30] sm:$0xff] 0.0
    %29 = vst [vmem:[#allocation2 + $0x38] sm:$0xff] 0.0
    %30 = vst [vmem:[#allocation2 + $0x40] sm:$0xff] 0.0
    %31 = vst [vmem:[#allocation2 + $0x48] sm:$0xff] 0.0
    %32 = vst [vmem:[#allocation2 + $0x50] sm:$0xff] 0.0
    %33 = vst [vmem:[#allocation2 + $0x58] sm:$0xff] 0.0
    %34 = vst [vmem:[#allocation2 + $0x60] sm:$0xff] 0.0
    %35 = vst [vmem:[#allocation2 + $0x68] sm:$0xff] 0.0
    %36 = vst [vmem:[#allocation2 + $0x70] sm:$0xff] 0.0
    %37 = vst [vmem:[#allocation2 + $0x78] sm:$0xff] 0.0
  $region21: #{edge_gcn_forward.4} parent=0 // pred_fallthru
    _
  %v38 = vld [vmem:[#allocation2] sm:$0xff]
  %v39 = vld [vmem:[#allocation2 + $0x8] sm:$0xff]
  %v40 = vld [vmem:[#allocation2 + $0x10] sm:$0xff]
  %v41 = vld [vmem:[#allocation2 + $0x18] sm:$0xff]
  %v42 = vld [vmem:[#allocation2 + $0x20] sm:$0xff]
  %v43 = vld [vmem:[#allocation2 + $0x28] sm:$0xff]
  %v44 = vld [vmem:[#allocation2 + $0x30] sm:$0xff]
  %v45 = vld [vmem:[#allocation2 + $0x38] sm:$0xff]
  %v46 = vld [vmem:[#allocation2 + $0x40] sm:$0xff]
  %v47 = vld [vmem:[#allocation2 + $0x48] sm:$0xff]
  %v48 = vld [vmem:[#allocation2 + $0x50] sm:$0xff]
  %v49 = vld [vmem:[#allocation2 + $0x58] sm:$0xff]
  %v50 = vld [vmem:[#allocation2 + $0x60] sm:$0xff]
  %v51 = vld [vmem:[#allocation2 + $0x68] sm:$0xff]
  %v52 = vld [vmem:[#allocation2 + $0x70] sm:$0xff]
  %v53 = vld [vmem:[#allocation2 + $0x78] sm:$0xff]
  %v54 = vld [vmem:[%s0] sm:$0xf]
  %v55 = vld [vmem:[%s0 + $0x4] sm:$0xf]
  %v56 = vld [vmem:[%s0 + $0x8] sm:$0xf]
  %v57 = vld [vmem:[%s0 + $0xc] sm:$0xf]
  %v58 = vld [vmem:[%s0 + $0x10] sm:$0xf]
  %v59 = vld [vmem:[%s0 + $0x14] sm:$0xf]
  %v60 = vld [vmem:[%s0 + $0x18] sm:$0xf]
  %v61 = vld [vmem:[%s0 + $0x1c] sm:$0xf]
  %v62 = vld [vmem:[%s0 + $0x20] sm:$0xf]
  %v63 = vld [vmem:[%s0 + $0x24] sm:$0xf]
  %v64 = vld [vmem:[%s0 + $0x28] sm:$0xf]
  %v65 = vld [vmem:[%s0 + $0x2c] sm:$0xf]
  %v66 = vld [vmem:[%s0 + $0x30] sm:$0xf]
  %v67 = vld [vmem:[%s0 + $0x34] sm:$0xf]
  %v68 = vld [vmem:[%s0 + $0x38] sm:$0xf]
  %v69 = vld [vmem:[%s0 + $0x3c] sm:$0xf]
  %v70 = vld [vmem:[%s1] sm:$0xf]
  %v71 = vld [vmem:[%s1 + $0x4] sm:$0xf]
  %v72 = vld [vmem:[%s1 + $0x8] sm:$0xf]
  %v73 = vld [vmem:[%s1 + $0xc] sm:$0xf]
  %v74 = vld [vmem:[%s1 + $0x10] sm:$0xf]
  %v75 = vld [vmem:[%s1 + $0x14] sm:$0xf]
  %v76 = vld [vmem:[%s1 + $0x18] sm:$0xf]
  %v77 = vld [vmem:[%s1 + $0x1c] sm:$0xf]
  %v78 = vld [vmem:[%s1 + $0x20] sm:$0xf]
  %v79 = vld [vmem:[%s1 + $0x24] sm:$0xf]
  %v80 = vld [vmem:[%s1 + $0x28] sm:$0xf]
  %v81 = vld [vmem:[%s1 + $0x2c] sm:$0xf]
  %v82 = vld [vmem:[%s1 + $0x30] sm:$0xf]
  %v83 = vld [vmem:[%s1 + $0x34] sm:$0xf]
  %v84 = vld [vmem:[%s1 + $0x38] sm:$0xf]
  %v85 = vld [vmem:[%s1 + $0x3c] sm:$0xf]
  %v102 = vunpack.c.l.b16 %v54
  %v103 = vunpack.c.l.b16 %v55
  %v104 = vunpack.c.l.b16 %v56
  %v105 = vunpack.c.l.b16 %v57
  %v106 = vunpack.c.l.b16 %v58
  %v107 = vunpack.c.l.b16 %v59
  %v108 = vunpack.c.l.b16 %v60
  %v109 = vunpack.c.l.b16 %v61
  %v110 = vunpack.c.l.b16 %v62
  %v111 = vunpack.c.l.b16 %v63
  %v112 = vunpack.c.l.b16 %v64
  %v113 = vunpack.c.l.b16 %v65
  %v114 = vunpack.c.l.b16 %v66
  %v115 = vunpack.c.l.b16 %v67
  %v116 = vunpack.c.l.b16 %v68
  %v117 = vunpack.c.l.b16 %v69
  %v118 = vpack.c.b16 %v103, %v102
  %v119 = vpack.c.b16 %v105, %v104
  %v120 = vpack.c.b16 %v107, %v106
  %v121 = vpack.c.b16 %v109, %v108
  %v122 = vpack.c.b16 %v111, %v110
  %v123 = vpack.c.b16 %v113, %v112
  %v124 = vpack.c.b16 %v115, %v114
  %v125 = vpack.c.b16 %v117, %v116
  %v150 = vunpack.c.l.b16 %v70
  %v151 = vunpack.c.l.b16 %v71
  %v152 = vunpack.c.l.b16 %v72
  %v153 = vunpack.c.l.b16 %v73
  %v154 = vunpack.c.l.b16 %v74
  %v155 = vunpack.c.l.b16 %v75
  %v156 = vunpack.c.l.b16 %v76
  %v157 = vunpack.c.l.b16 %v77
  %v158 = vunpack.c.l.b16 %v78
  %v159 = vunpack.c.l.b16 %v79
  %v160 = vunpack.c.l.b16 %v80
  %v161 = vunpack.c.l.b16 %v81
  %v162 = vunpack.c.l.b16 %v82
  %v163 = vunpack.c.l.b16 %v83
  %v164 = vunpack.c.l.b16 %v84
  %v165 = vunpack.c.l.b16 %v85
  %v166 = vpack.c.b16 %v151, %v150
  %v167 = vpack.c.b16 %v153, %v152
  %v168 = vpack.c.b16 %v155, %v154
  %v169 = vpack.c.b16 %v157, %v156
  %v170 = vpack.c.b16 %v159, %v158
  %v171 = vpack.c.b16 %v161, %v160
  %v172 = vpack.c.b16 %v163, %v162
  %v173 = vpack.c.b16 %v165, %v164
  %182 = vmatprep.subr.bf16.mxu0 0
  %183 = vmatpush1.bf16.msra.mxu0 %v166
  %184 = vmatprep.subr.bf16.mxu0 0
  %185 = vmatpush1.bf16.msra.mxu0 %v167
  %186 = vmatprep.subr.bf16.mxu0 0
  %187 = vmatpush1.bf16.msra.mxu0 %v168
  %188 = vmatprep.subr.bf16.mxu0 0
  %189 = vmatpush1.bf16.msra.mxu0 %v169
  %190 = vmatprep.subr.bf16.mxu0 0
  %191 = vmatpush1.bf16.msra.mxu0 %v170
  %192 = vmatprep.subr.bf16.mxu0 0
  %193 = vmatpush1.bf16.msra.mxu0 %v171
  %194 = vmatprep.subr.bf16.mxu0 0
  %195 = vmatpush1.bf16.msra.mxu0 %v172
  %196 = vmatprep.subr.bf16.mxu0 0
  %197 = vmatpush1.bf16.msra.mxu0 %v173
  %198 = vmatprep.subr.bf16.mxu0 0
  %199 = vmatpush1.bf16.msra.mxu0 0
  %200 = vmatprep.subr.bf16.mxu0 0
  %201 = vmatpush1.bf16.msra.mxu0 0
  %202 = vmatprep.subr.bf16.mxu0 0
  %203 = vmatpush1.bf16.msra.mxu0 0
  %204 = vmatprep.subr.bf16.mxu0 0
  %205 = vmatpush1.bf16.msra.mxu0 0
  %206 = vmatprep.subr.bf16.mxu0 0
  %207 = vmatpush1.bf16.msra.mxu0 0
  %208 = vmatprep.subr.bf16.mxu0 0
  %209 = vmatpush1.bf16.msra.mxu0 0
  %210 = vmatprep.subr.bf16.mxu0 0
  %211 = vmatpush1.bf16.msra.mxu0 0
  %212 = vmatprep.subr.bf16.mxu0 0
  %213 = vmatpush1.bf16.msra.mxu0 0
  %214 = vmatprep.mubr.bf16.mxu0 0
  %215 = vmatmul.mubr.bf16.gmra.mrb[0].mxu0 %v118
  %v216 = vpop.f32.mrb[0].mxu0
  %v217 = vadd.f32 0.0, %v216
  %v218 = vpop.f32.mrb[0].mxu0
  %v219 = vpop.f32.mrb[0].mxu0
  %v220 = vadd.f32 0.0, %v219
  %v221 = vpop.f32.mrb[0].mxu0
  %222 = vmatprep.mubr.bf16.mxu0 0
  %223 = vmatmul.mubr.bf16.gmra.mrb[0].mxu0 %v119
  %v224 = vpop.f32.mrb[0].mxu0
  %v225 = vadd.f32 0.0, %v224
  %v226 = vpop.f32.mrb[0].mxu0
  %v227 = vpop.f32.mrb[0].mxu0
  %v228 = vadd.f32 0.0, %v227
  %v229 = vpop.f32.mrb[0].mxu0
  %230 = vmatprep.mubr.bf16.mxu0 0
  %231 = vmatmul.mubr.bf16.gmra.mrb[0].mxu0 %v120
  %v232 = vpop.f32.mrb[0].mxu0
  %v233 = vadd.f32 0.0, %v232
  %v234 = vpop.f32.mrb[0].mxu0
  %v235 = vpop.f32.mrb[0].mxu0
  %v236 = vadd.f32 0.0, %v235
  %v237 = vpop.f32.mrb[0].mxu0
  %238 = vmatprep.mubr.bf16.mxu0 0
  %239 = vmatmul.mubr.bf16.gmra.mrb[0].mxu0 %v121
  %v240 = vpop.f32.mrb[0].mxu0
  %v241 = vadd.f32 0.0, %v240
  %v242 = vpop.f32.mrb[0].mxu0
  %v243 = vpop.f32.mrb[0].mxu0
  %v244 = vadd.f32 0.0, %v243
  %v245 = vpop.f32.mrb[0].mxu0
  %246 = vmatprep.mubr.bf16.mxu0 0
  %247 = vmatmul.mubr.bf16.gmra.mrb[0].mxu0 %v122
  %v248 = vpop.f32.mrb[0].mxu0
  %v249 = vadd.f32 0.0, %v248
  %v250 = vpop.f32.mrb[0].mxu0
  %v251 = vpop.f32.mrb[0].mxu0
  %v252 = vadd.f32 0.0, %v251
  %v253 = vpop.f32.mrb[0].mxu0
  %254 = vmatprep.mubr.bf16.mxu0 0
  %255 = vmatmul.mubr.bf16.gmra.mrb[0].mxu0 %v123
  %v256 = vpop.f32.mrb[0].mxu0
  %v257 = vadd.f32 0.0, %v256
  %v258 = vpop.f32.mrb[0].mxu0
  %v259 = vpop.f32.mrb[0].mxu0
  %v260 = vadd.f32 0.0, %v259
  %v261 = vpop.f32.mrb[0].mxu0
  %262 = vmatprep.mubr.bf16.mxu0 0
  %263 = vmatmul.mubr.bf16.gmra.mrb[0].mxu0 %v124
  %v264 = vpop.f32.mrb[0].mxu0
  %v265 = vadd.f32 0.0, %v264
  %v266 = vpop.f32.mrb[0].mxu0
  %v267 = vpop.f32.mrb[0].mxu0
  %v268 = vadd.f32 0.0, %v267
  %v269 = vpop.f32.mrb[0].mxu0
  %270 = vmatprep.mubr.bf16.mxu0 0
  %271 = vmatmul.mubr.bf16.gmra.mrb[0].mxu0 %v125
  %v272 = vpop.f32.mrb[0].mxu0
  %v273 = vadd.f32 0.0, %v272
  %v274 = vpop.f32.mrb[0].mxu0
  %v275 = vpop.f32.mrb[0].mxu0
  %v276 = vadd.f32 0.0, %v275
  %v277 = vpop.f32.mrb[0].mxu0
  %278 = vdwg.mxu0
  %v279 = vadd.f32 %v38, %v217
  %v280 = vadd.f32 %v39, %v220
  %v281 = vadd.f32 %v40, %v225
  %v282 = vadd.f32 %v41, %v228
  %v283 = vadd.f32 %v42, %v233
  %v284 = vadd.f32 %v43, %v236
  %v285 = vadd.f32 %v44, %v241
  %v286 = vadd.f32 %v45, %v244
  %v287 = vadd.f32 %v46, %v249
  %v288 = vadd.f32 %v47, %v252
  %v289 = vadd.f32 %v48, %v257
  %v290 = vadd.f32 %v49, %v260
  %v291 = vadd.f32 %v50, %v265
  %v292 = vadd.f32 %v51, %v268
  %v293 = vadd.f32 %v52, %v273
  %v294 = vadd.f32 %v53, %v276
  %295 = vst [vmem:[#allocation2] sm:$0xff] %v279
  %296 = vst [vmem:[#allocation2 + $0x8] sm:$0xff] %v280
  %297 = vst [vmem:[#allocation2 + $0x10] sm:$0xff] %v281
  %298 = vst [vmem:[#allocation2 + $0x18] sm:$0xff] %v282
  %299 = vst [vmem:[#allocation2 + $0x20] sm:$0xff] %v283
  %300 = vst [vmem:[#allocation2 + $0x28] sm:$0xff] %v284
  %301 = vst [vmem:[#allocation2 + $0x30] sm:$0xff] %v285
  %302 = vst [vmem:[#allocation2 + $0x38] sm:$0xff] %v286
  %303 = vst [vmem:[#allocation2 + $0x40] sm:$0xff] %v287
  %304 = vst [vmem:[#allocation2 + $0x48] sm:$0xff] %v288
  %305 = vst [vmem:[#allocation2 + $0x50] sm:$0xff] %v289
  %306 = vst [vmem:[#allocation2 + $0x58] sm:$0xff] %v290
  %307 = vst [vmem:[#allocation2 + $0x60] sm:$0xff] %v291
  %308 = vst [vmem:[#allocation2 + $0x68] sm:$0xff] %v292
  %309 = vst [vmem:[#allocation2 + $0x70] sm:$0xff] %v293
  %310 = vst [vmem:[#allocation2 + $0x78] sm:$0xff] %v294
  // Predicated region
  $region22: #{edge_gcn_forward.4} parent=0 // pred_check
    %p311 = pneg %p18
  $region23: #{edge_gcn_forward.4} parent=0 // pred_check_branch
    %313 = sbr.rel (%p311) target = $region25
  $region24: #{edge_gcn_forward.4} parent=0 // pred_region
    %v314 = vld [vmem:[%s2] sm:$0xff]
    %v315 = vld [vmem:[%s2 + $0x8] sm:$0xff]
    %v316 = vld [vmem:[%s2 + $0x10] sm:$0xff]
    %v317 = vld [vmem:[%s2 + $0x18] sm:$0xff]
    %v318 = vld [vmem:[%s2 + $0x20] sm:$0xff]
    %v319 = vld [vmem:[%s2 + $0x28] sm:$0xff]
    %v320 = vld [vmem:[%s2 + $0x30] sm:$0xff]
    %v321 = vld [vmem:[%s2 + $0x38] sm:$0xff]
    %v322 = vld [vmem:[%s2 + $0x40] sm:$0xff]
    %v323 = vld [vmem:[%s2 + $0x48] sm:$0xff]
    %v324 = vld [vmem:[%s2 + $0x50] sm:$0xff]
    %v325 = vld [vmem:[%s2 + $0x58] sm:$0xff]
    %v326 = vld [vmem:[%s2 + $0x60] sm:$0xff]
    %v327 = vld [vmem:[%s2 + $0x68] sm:$0xff]
    %v328 = vld [vmem:[%s2 + $0x70] sm:$0xff]
    %v329 = vld [vmem:[%s2 + $0x78] sm:$0xff]
    %v330 = vld [vmem:[#allocation2] sm:$0xff]
    %v331 = vld [vmem:[#allocation2 + $0x8] sm:$0xff]
    %v332 = vld [vmem:[#allocation2 + $0x10] sm:$0xff]
    %v333 = vld [vmem:[#allocation2 + $0x18] sm:$0xff]
    %v334 = vld [vmem:[#allocation2 + $0x20] sm:$0xff]
    %v335 = vld [vmem:[#allocation2 + $0x28] sm:$0xff]
    %v336 = vld [vmem:[#allocation2 + $0x30] sm:$0xff]
    %v337 = vld [vmem:[#allocation2 + $0x38] sm:$0xff]
    %v338 = vld [vmem:[#allocation2 + $0x40] sm:$0xff]
    %v339 = vld [vmem:[#allocation2 + $0x48] sm:$0xff]
    %v340 = vld [vmem:[#allocation2 + $0x50] sm:$0xff]
    %v341 = vld [vmem:[#allocation2 + $0x58] sm:$0xff]
    %v342 = vld [vmem:[#allocation2 + $0x60] sm:$0xff]
    %v343 = vld [vmem:[#allocation2 + $0x68] sm:$0xff]
    %v344 = vld [vmem:[#allocation2 + $0x70] sm:$0xff]
    %v345 = vld [vmem:[#allocation2 + $0x78] sm:$0xff]
    %347 = vset.pattern.permute.xlu0 0
    %348 = vperm.xlu0 %347, %v314
    %v349 = vpop.permute.xlu0 %348
    %352 = vset.pattern.permute.xlu0 0
    %353 = vperm.xlu0 %352, %v315
    %v354 = vpop.permute.xlu0 %353
    %357 = vset.pattern.permute.xlu0 0
    %358 = vperm.xlu0 %357, %v316
    %v359 = vpop.permute.xlu0 %358
    %362 = vset.pattern.permute.xlu0 0
    %363 = vperm.xlu0 %362, %v317
    %v364 = vpop.permute.xlu0 %363
    %367 = vset.pattern.permute.xlu0 0
    %368 = vperm.xlu0 %367, %v318
    %v369 = vpop.permute.xlu0 %368
    %372 = vset.pattern.permute.xlu0 0
    %373 = vperm.xlu0 %372, %v319
    %v374 = vpop.permute.xlu0 %373
    %377 = vset.pattern.permute.xlu0 0
    %378 = vperm.xlu0 %377, %v320
    %v379 = vpop.permute.xlu0 %378
    %382 = vset.pattern.permute.xlu0 0
    %383 = vperm.xlu0 %382, %v321
    %v384 = vpop.permute.xlu0 %383
    %387 = vset.pattern.permute.xlu0 0
    %388 = vperm.xlu0 %387, %v322
    %v389 = vpop.permute.xlu0 %388
    %392 = vset.pattern.permute.xlu0 0
    %393 = vperm.xlu0 %392, %v323
    %v394 = vpop.permute.xlu0 %393
    %397 = vset.pattern.permute.xlu0 0
    %398 = vperm.xlu0 %397, %v324
    %v399 = vpop.permute.xlu0 %398
    %402 = vset.pattern.permute.xlu0 0
    %403 = vperm.xlu0 %402, %v325
    %v404 = vpop.permute.xlu0 %403
    %407 = vset.pattern.permute.xlu0 0
    %408 = vperm.xlu0 %407, %v326
    %v409 = vpop.permute.xlu0 %408
    %412 = vset.pattern.permute.xlu0 0
    %413 = vperm.xlu0 %412, %v327
    %v414 = vpop.permute.xlu0 %413
    %417 = vset.pattern.permute.xlu0 0
    %418 = vperm.xlu0 %417, %v328
    %v419 = vpop.permute.xlu0 %418
    %422 = vset.pattern.permute.xlu0 0
    %423 = vperm.xlu0 %422, %v329
    %v424 = vpop.permute.xlu0 %423
    %v426 = vmul.f32 %v349, %v330
    %v427 = vmul.f32 %v354, %v331
    %v428 = vmul.f32 %v359, %v332
    %v429 = vmul.f32 %v364, %v333
    %v430 = vmul.f32 %v369, %v334
    %v431 = vmul.f32 %v374, %v335
    %v432 = vmul.f32 %v379, %v336
    %v433 = vmul.f32 %v384, %v337
    %v434 = vmul.f32 %v389, %v338
    %v435 = vmul.f32 %v394, %v339
    %v436 = vmul.f32 %v399, %v340
    %v437 = vmul.f32 %v404, %v341
    %v438 = vmul.f32 %v409, %v342
    %v439 = vmul.f32 %v414, %v343
    %v440 = vmul.f32 %v419, %v344
    %v441 = vmul.f32 %v424, %v345
    %v442 = vld [vmem:[%s3] sm:$0x1]
    %v444 = vlaneseq
    %v445 = vshrl.u32 %v444, 7
    %v446 = vsub.s32 0, %v445
    %v447 = vrot.slane %v442, %v446
    %v449 = vadd.f32 %v426, %v447
    %v450 = vadd.f32 %v427, %v447
    %v451 = vadd.f32 %v428, %v447
    %v452 = vadd.f32 %v429, %v447
    %v453 = vadd.f32 %v430, %v447
    %v454 = vadd.f32 %v431, %v447
    %v455 = vadd.f32 %v432, %v447
    %v456 = vadd.f32 %v433, %v447
    %v457 = vadd.f32 %v434, %v447
    %v458 = vadd.f32 %v435, %v447
    %v459 = vadd.f32 %v436, %v447
    %v460 = vadd.f32 %v437, %v447
    %v461 = vadd.f32 %v438, %v447
    %v462 = vadd.f32 %v439, %v447
    %v463 = vadd.f32 %v440, %v447
    %v464 = vadd.f32 %v441, %v447
    %v465 = vpack.c.bf16 %v450, %v449
    %v466 = vpack.c.bf16 %v452, %v451
    %v467 = vpack.c.bf16 %v454, %v453
    %v468 = vpack.c.bf16 %v456, %v455
    %v469 = vpack.c.bf16 %v458, %v457
    %v470 = vpack.c.bf16 %v460, %v459
    %v471 = vpack.c.bf16 %v462, %v461
    %v472 = vpack.c.bf16 %v464, %v463
    %v481 = vunpack.c.l.b16 %v465
    %v482 = vunpack.c.h.b16 %v465
    %v483 = vunpack.c.l.b16 %v466
    %v484 = vunpack.c.h.b16 %v466
    %v485 = vunpack.c.l.b16 %v467
    %v486 = vunpack.c.h.b16 %v467
    %v487 = vunpack.c.l.b16 %v468
    %v488 = vunpack.c.h.b16 %v468
    %v489 = vunpack.c.l.b16 %v469
    %v490 = vunpack.c.h.b16 %v469
    %v491 = vunpack.c.l.b16 %v470
    %v492 = vunpack.c.h.b16 %v470
    %v493 = vunpack.c.l.b16 %v471
    %v494 = vunpack.c.h.b16 %v471
    %v495 = vunpack.c.l.b16 %v472
    %v496 = vunpack.c.h.b16 %v472
    %v497 = vpack.c.b16 %v481, %v481
    %v498 = vpack.c.b16 %v482, %v482
    %v499 = vpack.c.b16 %v483, %v483
    %v500 = vpack.c.b16 %v484, %v484
    %v501 = vpack.c.b16 %v485, %v485
    %v502 = vpack.c.b16 %v486, %v486
    %v503 = vpack.c.b16 %v487, %v487
    %v504 = vpack.c.b16 %v488, %v488
    %v505 = vpack.c.b16 %v489, %v489
    %v506 = vpack.c.b16 %v490, %v490
    %v507 = vpack.c.b16 %v491, %v491
    %v508 = vpack.c.b16 %v492, %v492
    %v509 = vpack.c.b16 %v493, %v493
    %v510 = vpack.c.b16 %v494, %v494
    %v511 = vpack.c.b16 %v495, %v495
    %v512 = vpack.c.b16 %v496, %v496
    %529 = vst [vmem:[%s4] sm:$0xf] %v497
    %530 = vst [vmem:[%s4 + $0x4] sm:$0xf] %v498
    %531 = vst [vmem:[%s4 + $0x8] sm:$0xf] %v499
    %532 = vst [vmem:[%s4 + $0xc] sm:$0xf] %v500
    %533 = vst [vmem:[%s4 + $0x10] sm:$0xf] %v501
    %534 = vst [vmem:[%s4 + $0x14] sm:$0xf] %v502
    %535 = vst [vmem:[%s4 + $0x18] sm:$0xf] %v503
    %536 = vst [vmem:[%s4 + $0x1c] sm:$0xf] %v504
    %537 = vst [vmem:[%s4 + $0x20] sm:$0xf] %v505
    %538 = vst [vmem:[%s4 + $0x24] sm:$0xf] %v506
    %539 = vst [vmem:[%s4 + $0x28] sm:$0xf] %v507
    %540 = vst [vmem:[%s4 + $0x2c] sm:$0xf] %v508
    %541 = vst [vmem:[%s4 + $0x30] sm:$0xf] %v509
    %542 = vst [vmem:[%s4 + $0x34] sm:$0xf] %v510
    %543 = vst [vmem:[%s4 + $0x38] sm:$0xf] %v511
    %544 = vst [vmem:[%s4 + $0x3c] sm:$0xf] %v512
  $region25: #{edge_gcn_forward.4} parent=0 // pred_fallthru
    _
  // Predicated region
  $region26: #{edge_gcn_forward.4} parent=0 // pred_check
    _
  $region27: #{edge_gcn_forward.4} parent=0 // pred_check_branch
    %546 = sbr.rel (0) target = $region29
  $region28: #{edge_gcn_forward.4} parent=0 // pred_region
    _
  $region29: #{edge_gcn_forward.4} parent=0 // pred_fallthru
    _
  // Predicated region
  $region30: #{edge_gcn_forward.4} parent=0 // pred_check
    _
  $region31: #{edge_gcn_forward.4} parent=0 // pred_check_branch
    %548 = sbr.rel (0) target = $region33
  $region32: #{edge_gcn_forward.4} parent=0 // pred_region
    _
  $region33: #{edge_gcn_forward.4} parent=0 // pred_fallthru
    _

// kernel: edge_gcn_forward.5
$region0: #{edge_gcn_forward.5}
  #allocation0 [shape = 'u32[]', space=smem, size = 0x4, offset = 0x4, fixed_abs, tag = 'smem constant byte address 0x4 - core index']
  #allocation1 [shape = 'u32[144,128]{1,0:T(1,128)}', space=vmem, size = 0x12000, scoped, tag = 'internal scratch']
  %s0 = inlined_call_operand.vmem [shape: bf16[128,128], index: 0, kind: input, shape index: {}]
  %s1 = inlined_call_operand.vmem [shape: bf16[128,128], index: 1, kind: input, shape index: {}]
  %s2 = inlined_call_operand.vmem [shape: f32[1,128], index: 2, kind: input, shape index: {}]
  %s3 = inlined_call_operand.vmem [shape: bf16[128,2], index: 3, kind: input, shape index: {}]
  %s4 = inlined_call_operand.vmem [shape: f32[1,2], index: 4, kind: input, shape index: {}]
  %s5 = inlined_call_operand.vmem [shape: f32[128,2], index: 5, kind: output, shape index: {}]
  %s6 = sld [smem:[#allocation0]]
  $region30: #{edge_gcn_forward.5} parent=0
    _
  %s8 = ssub.s32 1, %s6
  %s9 = scalar_select 0, %s8, %s6
  // Predicated region
  $region2: #{edge_gcn_forward.5} parent=0 // pred_check
    _
  $region3: #{edge_gcn_forward.5} parent=0 // pred_check_branch
    %11 = sbr.rel (0) target = $region5
  $region4: #{edge_gcn_forward.5} parent=0 // pred_region
    _
  $region5: #{edge_gcn_forward.5} parent=0 // pred_fallthru
    _
  // Predicated region
  $region6: #{edge_gcn_forward.5} parent=0 // pred_check
    _
  $region7: #{edge_gcn_forward.5} parent=0 // pred_check_branch
    %13 = sbr.rel (0) target = $region9
  $region8: #{edge_gcn_forward.5} parent=0 // pred_region
    _
  $region9: #{edge_gcn_forward.5} parent=0 // pred_fallthru
    _
  // Predicated region
  $region10: #{edge_gcn_forward.5} parent=0 // pred_check
    _
  $region11: #{edge_gcn_forward.5} parent=0 // pred_check_branch
    %15 = sbr.rel (0) target = $region13
  $region12: #{edge_gcn_forward.5} parent=0 // pred_region
    _
  $region13: #{edge_gcn_forward.5} parent=0 // pred_fallthru
    _
  // Predicated region
  $region14: #{edge_gcn_forward.5} parent=0 // pred_check
    _
  $region15: #{edge_gcn_forward.5} parent=0 // pred_check_branch
    %17 = sbr.rel (0) target = $region17
  $region16: #{edge_gcn_forward.5} parent=0 // pred_region
    _
  $region17: #{edge_gcn_forward.5} parent=0 // pred_fallthru
    _
  // Predicated region
  $region18: #{edge_gcn_forward.5} parent=0 // pred_check
    _
  $region19: #{edge_gcn_forward.5} parent=0 // pred_check_branch
    %19 = sbr.rel (0) target = $region21
  $region20: #{edge_gcn_forward.5} parent=0 // pred_region
    _
  $region21: #{edge_gcn_forward.5} parent=0 // pred_fallthru
    _
  %v21 = vld [vmem:[%s0] sm:$0xf]
  %v22 = vld [vmem:[%s0 + $0x4] sm:$0xf]
  %v23 = vld [vmem:[%s0 + $0x8] sm:$0xf]
  %v24 = vld [vmem:[%s0 + $0xc] sm:$0xf]
  %v25 = vld [vmem:[%s0 + $0x10] sm:$0xf]
  %v26 = vld [vmem:[%s0 + $0x14] sm:$0xf]
  %v27 = vld [vmem:[%s0 + $0x18] sm:$0xf]
  %v28 = vld [vmem:[%s0 + $0x1c] sm:$0xf]
  %v29 = vld [vmem:[%s0 + $0x20] sm:$0xf]
  %v30 = vld [vmem:[%s0 + $0x24] sm:$0xf]
  %v31 = vld [vmem:[%s0 + $0x28] sm:$0xf]
  %v32 = vld [vmem:[%s0 + $0x2c] sm:$0xf]
  %v33 = vld [vmem:[%s0 + $0x30] sm:$0xf]
  %v34 = vld [vmem:[%s0 + $0x34] sm:$0xf]
  %v35 = vld [vmem:[%s0 + $0x38] sm:$0xf]
  %v36 = vld [vmem:[%s0 + $0x3c] sm:$0xf]
  %v37 = vld [vmem:[%s1] sm:$0xf]
  %v38 = vld [vmem:[%s1 + $0x4] sm:$0xf]
  %v39 = vld [vmem:[%s1 + $0x8] sm:$0xf]
  %v40 = vld [vmem:[%s1 + $0xc] sm:$0xf]
  %v41 = vld [vmem:[%s1 + $0x10] sm:$0xf]
  %v42 = vld [vmem:[%s1 + $0x14] sm:$0xf]
  %v43 = vld [vmem:[%s1 + $0x18] sm:$0xf]
  %v44 = vld [vmem:[%s1 + $0x1c] sm:$0xf]
  %v45 = vld [vmem:[%s1 + $0x20] sm:$0xf]
  %v46 = vld [vmem:[%s1 + $0x24] sm:$0xf]
  %v47 = vld [vmem:[%s1 + $0x28] sm:$0xf]
  %v48 = vld [vmem:[%s1 + $0x2c] sm:$0xf]
  %v49 = vld [vmem:[%s1 + $0x30] sm:$0xf]
  %v50 = vld [vmem:[%s1 + $0x34] sm:$0xf]
  %v51 = vld [vmem:[%s1 + $0x38] sm:$0xf]
  %v52 = vld [vmem:[%s1 + $0x3c] sm:$0xf]
  %v53 = vld [vmem:[%s2] sm:$0x1]
  %v55 = vlaneseq
  %v56 = vshrl.u32 %v55, 7
  %v57 = vsub.s32 0, %v56
  %v58 = vrot.slane %v53, %v57
  %v76 = vunpack.c.l.b16 %v21
  %v77 = vunpack.c.l.b16 %v22
  %v78 = vunpack.c.l.b16 %v23
  %v79 = vunpack.c.l.b16 %v24
  %v80 = vunpack.c.l.b16 %v25
  %v81 = vunpack.c.l.b16 %v26
  %v82 = vunpack.c.l.b16 %v27
  %v83 = vunpack.c.l.b16 %v28
  %v84 = vunpack.c.l.b16 %v29
  %v85 = vunpack.c.l.b16 %v30
  %v86 = vunpack.c.l.b16 %v31
  %v87 = vunpack.c.l.b16 %v32
  %v88 = vunpack.c.l.b16 %v33
  %v89 = vunpack.c.l.b16 %v34
  %v90 = vunpack.c.l.b16 %v35
  %v91 = vunpack.c.l.b16 %v36
  %v92 = vpack.c.b16 %v77, %v76
  %v93 = vpack.c.b16 %v79, %v78
  %v94 = vpack.c.b16 %v81, %v80
  %v95 = vpack.c.b16 %v83, %v82
  %v96 = vpack.c.b16 %v85, %v84
  %v97 = vpack.c.b16 %v87, %v86
  %v98 = vpack.c.b16 %v89, %v88
  %v99 = vpack.c.b16 %v91, %v90
  %v124 = vunpack.c.l.b16 %v37
  %v125 = vunpack.c.l.b16 %v38
  %v126 = vunpack.c.l.b16 %v39
  %v127 = vunpack.c.l.b16 %v40
  %v128 = vunpack.c.l.b16 %v41
  %v129 = vunpack.c.l.b16 %v42
  %v130 = vunpack.c.l.b16 %v43
  %v131 = vunpack.c.l.b16 %v44
  %v132 = vunpack.c.l.b16 %v45
  %v133 = vunpack.c.l.b16 %v46
  %v134 = vunpack.c.l.b16 %v47
  %v135 = vunpack.c.l.b16 %v48
  %v136 = vunpack.c.l.b16 %v49
  %v137 = vunpack.c.l.b16 %v50
  %v138 = vunpack.c.l.b16 %v51
  %v139 = vunpack.c.l.b16 %v52
  %v140 = vpack.c.b16 %v125, %v124
  %v141 = vpack.c.b16 %v127, %v126
  %v142 = vpack.c.b16 %v129, %v128
  %v143 = vpack.c.b16 %v131, %v130
  %v144 = vpack.c.b16 %v133, %v132
  %v145 = vpack.c.b16 %v135, %v134
  %v146 = vpack.c.b16 %v137, %v136
  %v147 = vpack.c.b16 %v139, %v138
  %156 = vmatprep.subr.bf16.mxu0 0
  %157 = vmatpush1.bf16.msra.mxu0 %v140
  %158 = vmatprep.subr.bf16.mxu0 0
  %159 = vmatpush1.bf16.msra.mxu0 %v141
  %160 = vmatprep.subr.bf16.mxu0 0
  %161 = vmatpush1.bf16.msra.mxu0 %v142
  %162 = vmatprep.subr.bf16.mxu0 0
  %163 = vmatpush1.bf16.msra.mxu0 %v143
  %164 = vmatprep.subr.bf16.mxu0 0
  %165 = vmatpush1.bf16.msra.mxu0 %v144
  %166 = vmatprep.subr.bf16.mxu0 0
  %167 = vmatpush1.bf16.msra.mxu0 %v145
  %168 = vmatprep.subr.bf16.mxu0 0
  %169 = vmatpush1.bf16.msra.mxu0 %v146
  %170 = vmatprep.subr.bf16.mxu0 0
  %171 = vmatpush1.bf16.msra.mxu0 %v147
  %172 = vmatprep.subr.bf16.mxu0 0
  %173 = vmatpush1.bf16.msra.mxu0 0
  %174 = vmatprep.subr.bf16.mxu0 0
  %175 = vmatpush1.bf16.msra.mxu0 0
  %176 = vmatprep.subr.bf16.mxu0 0
  %177 = vmatpush1.bf16.msra.mxu0 0
  %178 = vmatprep.subr.bf16.mxu0 0
  %179 = vmatpush1.bf16.msra.mxu0 0
  %180 = vmatprep.subr.bf16.mxu0 0
  %181 = vmatpush1.bf16.msra.mxu0 0
  %182 = vmatprep.subr.bf16.mxu0 0
  %183 = vmatpush1.bf16.msra.mxu0 0
  %184 = vmatprep.subr.bf16.mxu0 0
  %185 = vmatpush1.bf16.msra.mxu0 0
  %186 = vmatprep.subr.bf16.mxu0 0
  %187 = vmatpush1.bf16.msra.mxu0 0
  %188 = vmatprep.mubr.bf16.mxu0 0
  %189 = vmatmul.mubr.bf16.gmra.mrb[0].mxu0 %v92
  %v190 = vpop.f32.mrb[0].mxu0
  %v191 = vadd.f32 %v58, %v190
  %v192 = vpop.f32.mrb[0].mxu0
  %v193 = vpop.f32.mrb[0].mxu0
  %v194 = vadd.f32 %v58, %v193
  %v195 = vpop.f32.mrb[0].mxu0
  %196 = vmatprep.mubr.bf16.mxu0 0
  %197 = vmatmul.mubr.bf16.gmra.mrb[0].mxu0 %v93
  %v198 = vpop.f32.mrb[0].mxu0
  %v199 = vadd.f32 %v58, %v198
  %v200 = vpop.f32.mrb[0].mxu0
  %v201 = vpop.f32.mrb[0].mxu0
  %v202 = vadd.f32 %v58, %v201
  %v203 = vpop.f32.mrb[0].mxu0
  %204 = vmatprep.mubr.bf16.mxu0 0
  %205 = vmatmul.mubr.bf16.gmra.mrb[0].mxu0 %v94
  %v206 = vpop.f32.mrb[0].mxu0
  %v207 = vadd.f32 %v58, %v206
  %v208 = vpop.f32.mrb[0].mxu0
  %v209 = vpop.f32.mrb[0].mxu0
  %v210 = vadd.f32 %v58, %v209
  %v211 = vpop.f32.mrb[0].mxu0
  %212 = vmatprep.mubr.bf16.mxu0 0
  %213 = vmatmul.mubr.bf16.gmra.mrb[0].mxu0 %v95
  %v214 = vpop.f32.mrb[0].mxu0
  %v215 = vadd.f32 %v58, %v214
  %v216 = vpop.f32.mrb[0].mxu0
  %v217 = vpop.f32.mrb[0].mxu0
  %v218 = vadd.f32 %v58, %v217
  %v219 = vpop.f32.mrb[0].mxu0
  %220 = vmatprep.mubr.bf16.mxu0 0
  %221 = vmatmul.mubr.bf16.gmra.mrb[0].mxu0 %v96
  %v222 = vpop.f32.mrb[0].mxu0
  %v223 = vadd.f32 %v58, %v222
  %v224 = vpop.f32.mrb[0].mxu0
  %v225 = vpop.f32.mrb[0].mxu0
  %v226 = vadd.f32 %v58, %v225
  %v227 = vpop.f32.mrb[0].mxu0
  %228 = vmatprep.mubr.bf16.mxu0 0
  %229 = vmatmul.mubr.bf16.gmra.mrb[0].mxu0 %v97
  %v230 = vpop.f32.mrb[0].mxu0
  %v231 = vadd.f32 %v58, %v230
  %v232 = vpop.f32.mrb[0].mxu0
  %v233 = vpop.f32.mrb[0].mxu0
  %v234 = vadd.f32 %v58, %v233
  %v235 = vpop.f32.mrb[0].mxu0
  %236 = vmatprep.mubr.bf16.mxu0 0
  %237 = vmatmul.mubr.bf16.gmra.mrb[0].mxu0 %v98
  %v238 = vpop.f32.mrb[0].mxu0
  %v239 = vadd.f32 %v58, %v238
  %v240 = vpop.f32.mrb[0].mxu0
  %v241 = vpop.f32.mrb[0].mxu0
  %v242 = vadd.f32 %v58, %v241
  %v243 = vpop.f32.mrb[0].mxu0
  %244 = vmatprep.mubr.bf16.mxu0 0
  %245 = vmatmul.mubr.bf16.gmra.mrb[0].mxu0 %v99
  %v246 = vpop.f32.mrb[0].mxu0
  %v247 = vadd.f32 %v58, %v246
  %v248 = vpop.f32.mrb[0].mxu0
  %v249 = vpop.f32.mrb[0].mxu0
  %v250 = vadd.f32 %v58, %v249
  %v251 = vpop.f32.mrb[0].mxu0
  %252 = vdwg.mxu0
  %v253 = vmax.f32 %v191, 0.0
  %v254 = vmax.f32 %v194, 0.0
  %v255 = vmax.f32 %v199, 0.0
  %v256 = vmax.f32 %v202, 0.0
  %v257 = vmax.f32 %v207, 0.0
  %v258 = vmax.f32 %v210, 0.0
  %v259 = vmax.f32 %v215, 0.0
  %v260 = vmax.f32 %v218, 0.0
  %v261 = vmax.f32 %v223, 0.0
  %v262 = vmax.f32 %v226, 0.0
  %v263 = vmax.f32 %v231, 0.0
  %v264 = vmax.f32 %v234, 0.0
  %v265 = vmax.f32 %v239, 0.0
  %v266 = vmax.f32 %v242, 0.0
  %v267 = vmax.f32 %v247, 0.0
  %v268 = vmax.f32 %v250, 0.0
  %v269 = vpack.c.bf16 %v254, %v253
  %v270 = vpack.c.bf16 %v256, %v255
  %v271 = vpack.c.bf16 %v258, %v257
  %v272 = vpack.c.bf16 %v260, %v259
  %v273 = vpack.c.bf16 %v262, %v261
  %v274 = vpack.c.bf16 %v264, %v263
  %v275 = vpack.c.bf16 %v266, %v265
  %v276 = vpack.c.bf16 %v268, %v267
  %v277 = vld [vmem:[%s3] sm:$0xf]
  %v278 = vld [vmem:[%s3 + $0x4] sm:$0xf]
  %v279 = vld [vmem:[%s3 + $0x8] sm:$0xf]
  %v280 = vld [vmem:[%s3 + $0xc] sm:$0xf]
  %v281 = vld [vmem:[%s3 + $0x10] sm:$0xf]
  %v282 = vld [vmem:[%s3 + $0x14] sm:$0xf]
  %v283 = vld [vmem:[%s3 + $0x18] sm:$0xf]
  %v284 = vld [vmem:[%s3 + $0x1c] sm:$0xf]
  %v285 = vld [vmem:[%s3 + $0x20] sm:$0xf]
  %v286 = vld [vmem:[%s3 + $0x24] sm:$0xf]
  %v287 = vld [vmem:[%s3 + $0x28] sm:$0xf]
  %v288 = vld [vmem:[%s3 + $0x2c] sm:$0xf]
  %v289 = vld [vmem:[%s3 + $0x30] sm:$0xf]
  %v290 = vld [vmem:[%s3 + $0x34] sm:$0xf]
  %v291 = vld [vmem:[%s3 + $0x38] sm:$0xf]
  %v292 = vld [vmem:[%s3 + $0x3c] sm:$0xf]
  %v293 = vld [vmem:[%s4] sm:$0x1]
  %v295 = vlaneseq
  %v296 = vshrl.u32 %v295, 7
  %v297 = vsub.s32 0, %v296
  %v298 = vrot.slane %v293, %v297
  %v316 = vunpack.c.l.b16 %v277
  %v317 = vunpack.c.l.b16 %v278
  %v318 = vunpack.c.l.b16 %v279
  %v319 = vunpack.c.l.b16 %v280
  %v320 = vunpack.c.l.b16 %v281
  %v321 = vunpack.c.l.b16 %v282
  %v322 = vunpack.c.l.b16 %v283
  %v323 = vunpack.c.l.b16 %v284
  %v324 = vunpack.c.l.b16 %v285
  %v325 = vunpack.c.l.b16 %v286
  %v326 = vunpack.c.l.b16 %v287
  %v327 = vunpack.c.l.b16 %v288
  %v328 = vunpack.c.l.b16 %v289
  %v329 = vunpack.c.l.b16 %v290
  %v330 = vunpack.c.l.b16 %v291
  %v331 = vunpack.c.l.b16 %v292
  %v332 = vpack.c.b16 %v317, %v316
  %v333 = vpack.c.b16 %v319, %v318
  %v334 = vpack.c.b16 %v321, %v320
  %v335 = vpack.c.b16 %v323, %v322
  %v336 = vpack.c.b16 %v325, %v324
  %v337 = vpack.c.b16 %v327, %v326
  %v338 = vpack.c.b16 %v329, %v328
  %v339 = vpack.c.b16 %v331, %v330
  %348 = vmatprep.subr.bf16.mxu0 0
  %349 = vmatpush1.bf16.msra.mxu0 %v332
  %350 = vmatprep.subr.bf16.mxu0 0
  %351 = vmatpush1.bf16.msra.mxu0 %v333
  %352 = vmatprep.subr.bf16.mxu0 0
  %353 = vmatpush1.bf16.msra.mxu0 %v334
  %354 = vmatprep.subr.bf16.mxu0 0
  %355 = vmatpush1.bf16.msra.mxu0 %v335
  %356 = vmatprep.subr.bf16.mxu0 0
  %357 = vmatpush1.bf16.msra.mxu0 %v336
  %358 = vmatprep.subr.bf16.mxu0 0
  %359 = vmatpush1.bf16.msra.mxu0 %v337
  %360 = vmatprep.subr.bf16.mxu0 0
  %361 = vmatpush1.bf16.msra.mxu0 %v338
  %362 = vmatprep.subr.bf16.mxu0 0
  %363 = vmatpush1.bf16.msra.mxu0 %v339
  %364 = vmatprep.subr.bf16.mxu0 0
  %365 = vmatpush1.bf16.msra.mxu0 0
  %366 = vmatprep.subr.bf16.mxu0 0
  %367 = vmatpush1.bf16.msra.mxu0 0
  %368 = vmatprep.subr.bf16.mxu0 0
  %369 = vmatpush1.bf16.msra.mxu0 0
  %370 = vmatprep.subr.bf16.mxu0 0
  %371 = vmatpush1.bf16.msra.mxu0 0
  %372 = vmatprep.subr.bf16.mxu0 0
  %373 = vmatpush1.bf16.msra.mxu0 0
  %374 = vmatprep.subr.bf16.mxu0 0
  %375 = vmatpush1.bf16.msra.mxu0 0
  %376 = vmatprep.subr.bf16.mxu0 0
  %377 = vmatpush1.bf16.msra.mxu0 0
  %378 = vmatprep.subr.bf16.mxu0 0
  %379 = vmatpush1.bf16.msra.mxu0 0
  %380 = vmatprep.mubr.bf16.mxu0 0
  %381 = vmatmul.mubr.bf16.gmra.mrb[0].mxu0 %v269
  %v382 = vpop.f32.mrb[0].mxu0
  %v383 = vadd.f32 %v298, %v382
  %v384 = vpop.f32.mrb[0].mxu0
  %v385 = vpop.f32.mrb[0].mxu0
  %v386 = vadd.f32 %v298, %v385
  %v387 = vpop.f32.mrb[0].mxu0
  %388 = vmatprep.mubr.bf16.mxu0 0
  %389 = vmatmul.mubr.bf16.gmra.mrb[0].mxu0 %v270
  %v390 = vpop.f32.mrb[0].mxu0
  %v391 = vadd.f32 %v298, %v390
  %v392 = vpop.f32.mrb[0].mxu0
  %v393 = vpop.f32.mrb[0].mxu0
  %v394 = vadd.f32 %v298, %v393
  %v395 = vpop.f32.mrb[0].mxu0
  %396 = vmatprep.mubr.bf16.mxu0 0
  %397 = vmatmul.mubr.bf16.gmra.mrb[0].mxu0 %v271
  %v398 = vpop.f32.mrb[0].mxu0
  %v399 = vadd.f32 %v298, %v398
  %v400 = vpop.f32.mrb[0].mxu0
  %v401 = vpop.f32.mrb[0].mxu0
  %v402 = vadd.f32 %v298, %v401
  %v403 = vpop.f32.mrb[0].mxu0
  %404 = vmatprep.mubr.bf16.mxu0 0
  %405 = vmatmul.mubr.bf16.gmra.mrb[0].mxu0 %v272
  %v406 = vpop.f32.mrb[0].mxu0
  %v407 = vadd.f32 %v298, %v406
  %v408 = vpop.f32.mrb[0].mxu0
  %v409 = vpop.f32.mrb[0].mxu0
  %v410 = vadd.f32 %v298, %v409
  %v411 = vpop.f32.mrb[0].mxu0
  %412 = vmatprep.mubr.bf16.mxu0 0
  %413 = vmatmul.mubr.bf16.gmra.mrb[0].mxu0 %v273
  %v414 = vpop.f32.mrb[0].mxu0
  %v415 = vadd.f32 %v298, %v414
  %v416 = vpop.f32.mrb[0].mxu0
  %v417 = vpop.f32.mrb[0].mxu0
  %v418 = vadd.f32 %v298, %v417
  %v419 = vpop.f32.mrb[0].mxu0
  %420 = vmatprep.mubr.bf16.mxu0 0
  %421 = vmatmul.mubr.bf16.gmra.mrb[0].mxu0 %v274
  %v422 = vpop.f32.mrb[0].mxu0
  %v423 = vadd.f32 %v298, %v422
  %v424 = vpop.f32.mrb[0].mxu0
  %v425 = vpop.f32.mrb[0].mxu0
  %v426 = vadd.f32 %v298, %v425
  %v427 = vpop.f32.mrb[0].mxu0
  %428 = vmatprep.mubr.bf16.mxu0 0
  %429 = vmatmul.mubr.bf16.gmra.mrb[0].mxu0 %v275
  %v430 = vpop.f32.mrb[0].mxu0
  %v431 = vadd.f32 %v298, %v430
  %v432 = vpop.f32.mrb[0].mxu0
  %v433 = vpop.f32.mrb[0].mxu0
  %v434 = vadd.f32 %v298, %v433
  %v435 = vpop.f32.mrb[0].mxu0
  %436 = vmatprep.mubr.bf16.mxu0 0
  %437 = vmatmul.mubr.bf16.gmra.mrb[0].mxu0 %v276
  %v438 = vpop.f32.mrb[0].mxu0
  %v439 = vadd.f32 %v298, %v438
  %v440 = vpop.f32.mrb[0].mxu0
  %v441 = vpop.f32.mrb[0].mxu0
  %v442 = vadd.f32 %v298, %v441
  %v443 = vpop.f32.mrb[0].mxu0
  %444 = vdwg.mxu0
  %vm445 = vcmask 15360
  %446 = vst.msk [vmem:[%s5] sm:$0xff] %vm445, %v383
  %447 = vst.msk [vmem:[%s5 + $0x8] sm:$0xff] %vm445, %v386
  %448 = vst.msk [vmem:[%s5 + $0x10] sm:$0xff] %vm445, %v391
  %449 = vst.msk [vmem:[%s5 + $0x18] sm:$0xff] %vm445, %v394
  %450 = vst.msk [vmem:[%s5 + $0x20] sm:$0xff] %vm445, %v399
  %451 = vst.msk [vmem:[%s5 + $0x28] sm:$0xff] %vm445, %v402
  %452 = vst.msk [vmem:[%s5 + $0x30] sm:$0xff] %vm445, %v407
  %453 = vst.msk [vmem:[%s5 + $0x38] sm:$0xff] %vm445, %v410
  %454 = vst.msk [vmem:[%s5 + $0x40] sm:$0xff] %vm445, %v415
  %455 = vst.msk [vmem:[%s5 + $0x48] sm:$0xff] %vm445, %v418
  %456 = vst.msk [vmem:[%s5 + $0x50] sm:$0xff] %vm445, %v423
  %457 = vst.msk [vmem:[%s5 + $0x58] sm:$0xff] %vm445, %v426
  %458 = vst.msk [vmem:[%s5 + $0x60] sm:$0xff] %vm445, %v431
  %459 = vst.msk [vmem:[%s5 + $0x68] sm:$0xff] %vm445, %v434
  %460 = vst.msk [vmem:[%s5 + $0x70] sm:$0xff] %vm445, %v439
  %461 = vst.msk [vmem:[%s5 + $0x78] sm:$0xff] %vm445, %v442
  // Predicated region
  $region22: #{edge_gcn_forward.5} parent=0 // pred_check
    _
  $region23: #{edge_gcn_forward.5} parent=0 // pred_check_branch
    %463 = sbr.rel (0) target = $region25
  $region24: #{edge_gcn_forward.5} parent=0 // pred_region
    _
  $region25: #{edge_gcn_forward.5} parent=0 // pred_fallthru
    _
  // Predicated region
  $region26: #{edge_gcn_forward.5} parent=0 // pred_check
    _
  $region27: #{edge_gcn_forward.5} parent=0 // pred_check_branch
    %465 = sbr.rel (0) target = $region29
  $region28: #{edge_gcn_forward.5} parent=0 // pred_region
    _
  $region29: #{edge_gcn_forward.5} parent=0 // pred_fallthru
    _

</llo_original>
